<compile_context>
chip_gen: v6e
topology: v6e:2x2x1
jax: 0.10.0
libtpu: 0.0.40
codegen_flags: <defaults>
</compile_context>

<pallas_src>
import functools
import math

import jax
import jax.numpy as jnp
from jax.experimental import pallas as pl
from jax.experimental.pallas import tpu as pltpu


# ----------------------------------------------------------------------------
# math helpers
# ----------------------------------------------------------------------------
def _gelu(x):
    # tanh-approximate GELU (EUP friendly on TPU)
    c = 0.7978845608028654  # sqrt(2/pi)
    return 0.5 * x * (1.0 + jnp.tanh(c * (x + 0.044715 * x * x * x)))


# ----------------------------------------------------------------------------
# Pallas kernel (fused, lane-aligned, two I/O streams)
# ----------------------------------------------------------------------------
def _enhance_kernel(xv_ref, xa_ref,
                    ws1v_ref, ws1a_ref, w1_ref, w3v_ref, w3a_ref,
                    w24v_ref, w24a_ref,
                    bs1_ref, b13_ref, b24v_ref, b24a_ref,
                    ov_ref, oa_ref, *, mxu_dtype):
    f32 = jnp.float32

    xv = xv_ref[...].astype(f32)                     # (tile, Dv)
    xa = xa_ref[...].astype(f32)                     # (tile, Da)
    xv_m = xv.astype(mxu_dtype)
    xa_m = xa.astype(mxu_dtype)

    def stage1(i):
        # (tile, K) pre-activation: columns = [vision | audio], one contraction
        # per input stream (no concatenated activation ever materialized).
        return (jnp.dot(xv_m, ws1v_ref[i], preferred_element_type=f32)
                + jnp.dot(xa_m, ws1a_ref[i], preferred_element_type=f32)
                + bs1_ref[i])

    # --- decompose / gate / simple (three K-wide results; no lane slicing) ---
    dec = _gelu(stage1(0))
    # TODO(synk): if the bundle shows the VPU divide binding, compute the gate
    #             as exp(-x) (EUP) followed by pl.reciprocal(..., approx=True).
    gate = jax.nn.sigmoid(stage1(1))
    simp = gate * stage1(2)
    z1 = (dec + simp).astype(mxu_dtype)              # (tile, K)

    # --- lffn1: H = relu(z1 W1 + b1) W2 + b2 ---------------------------------
    h1 = jnp.maximum(
        jnp.dot(z1, w1_ref[...], preferred_element_type=f32) + b13_ref[0],
        0.0)                                         # (tile, 128) = [h1_v|h1_a]
    h1_m = h1.astype(mxu_dtype)
    hv = jnp.dot(h1_m, w24v_ref[0], preferred_element_type=f32) + b24v_ref[0]
    ha = jnp.dot(h1_m, w24a_ref[0], preferred_element_type=f32) + b24a_ref[0]

    # --- residual + lffn2 -----------------------------------------------------
    z2v = (hv + xv).astype(mxu_dtype)                # (tile, Dv)
    z2a = (ha + xa).astype(mxu_dtype)                # (tile, Da)
    h2 = jnp.maximum(
        jnp.dot(z2v, w3v_ref[...], preferred_element_type=f32)
        + jnp.dot(z2a, w3a_ref[...], preferred_element_type=f32)
        + b13_ref[1],
        0.0)                                         # (tile, 128)
    h2_m = h2.astype(mxu_dtype)
    ov = jnp.dot(h2_m, w24v_ref[1], preferred_element_type=f32) + b24v_ref[1]
    oa = jnp.dot(h2_m, w24a_ref[1], preferred_element_type=f32) + b24a_ref[1]

    ov_ref[...] = ov.astype(ov_ref.dtype)
    oa_ref[...] = oa.astype(oa_ref.dtype)


# ----------------------------------------------------------------------------
# weight packing (trace-time, in the wrapper)
# ----------------------------------------------------------------------------
def _pack_params(params_v, params_a, Dv, Da, mxu_dtype):
    (wdec_v, wcross_v, bdec_v, wg_v, bg_v, ws_v, bs_v,
     w1_v, b1_v, w2_v, b2_v, w3_v, b3_v, w4_v, b4_v) = params_v
    (wdec_a, wcross_a, bdec_a, wg_a, bg_a, ws_a, bs_a,
     w1_a, b1_a, w2_a, b2_a, w3_a, b3_a, w4_a, b4_a) = params_a
    f32 = jnp.float32
    H = w1_v.shape[1]

    zv_a = jnp.zeros((Dv, Da), f32)
    za_v = jnp.zeros((Da, Dv), f32)

    # stage-1: rows-from-vision ("top") / rows-from-audio ("bot"), K columns.
    dec_top = jnp.concatenate([wdec_v, wcross_a], axis=1)     # (Dv, K)
    dec_bot = jnp.concatenate([wcross_v, wdec_a], axis=1)     # (Da, K)
    gate_top = jnp.concatenate([wg_v, zv_a], axis=1)
    gate_bot = jnp.concatenate([za_v, wg_a], axis=1)
    simp_top = jnp.concatenate([ws_v, zv_a], axis=1)
    simp_bot = jnp.concatenate([za_v, ws_a], axis=1)
    ws1v = jnp.stack([dec_top, gate_top, simp_top])           # (3, Dv, K)
    ws1a = jnp.stack([dec_bot, gate_bot, simp_bot])           # (3, Da, K)

    # lffn first layers: block-diagonal into a packed 128-lane hidden.
    w1 = jnp.block([[w1_v, jnp.zeros((Dv, H), f32)],
                    [jnp.zeros((Da, H), f32), w1_a]])          # (K, 2H)
    w3v = jnp.concatenate([w3_v, jnp.zeros((Dv, H), f32)], axis=1)   # (Dv, 2H)
    w3a = jnp.concatenate([jnp.zeros((Da, H), f32), w3_a], axis=1)   # (Da, 2H)

    # lffn second layers: per-modality output columns, rows padded to 2H.
    w2v = jnp.concatenate([w2_v, jnp.zeros((H, Dv), f32)], axis=0)   # (2H, Dv)
    w4v = jnp.concatenate([w4_v, jnp.zeros((H, Dv), f32)], axis=0)
    w2a = jnp.concatenate([jnp.zeros((H, Da), f32), w2_a], axis=0)   # (2H, Da)
    w4a = jnp.concatenate([jnp.zeros((H, Da), f32), w4_a], axis=0)
    w24v = jnp.stack([w2v, w4v])                               # (2, 2H, Dv)
    w24a = jnp.stack([w2a, w4a])                               # (2, 2H, Da)

    # biases, stacked by shape; f32 (added after f32 accumulation).
    bs1 = jnp.stack([jnp.concatenate([bdec_v, bdec_a], axis=1),
                     jnp.concatenate([bg_v, bg_a], axis=1),
                     jnp.concatenate([bs_v, bs_a], axis=1)])   # (3, 1, K)
    b13 = jnp.stack([jnp.concatenate([b1_v, b1_a], axis=1),
                     jnp.concatenate([b3_v, b3_a], axis=1)])   # (2, 1, 2H)
    b24v = jnp.stack([b2_v, b4_v])                             # (2, 1, Dv)
    b24a = jnp.stack([b2_a, b4_a])                             # (2, 1, Da)

    mats = [m.astype(mxu_dtype) for m in (ws1v, ws1a, w1, w3v, w3a, w24v, w24a)]
    biases = [b.astype(f32) for b in (bs1, b13, b24v, b24a)]
    return mats, biases


# ----------------------------------------------------------------------------
# wrapper
# ----------------------------------------------------------------------------
def enhance_net_v3(X_v, X_a, params_v, params_a, *,
                   tile_n_max=2048, min_grid_steps=8,
                   mxu_dtype=jnp.bfloat16, io_dtype=None):
    """Fused EnhanceNet_v3 forward. X_v: (B,T,Dv), X_a: (B,T,Da)."""
    B, T, Dv = X_v.shape
    Ba, Ta, Da = X_a.shape
    assert (B, T) == (Ba, Ta)
    K = Dv + Da
    N = B * T

    xv = X_v.reshape(N, Dv)
    xa = X_a.reshape(N, Da)
    if io_dtype is not None:         # optional bf16 activation I/O
        xv = xv.astype(io_dtype)
        xa = xa.astype(io_dtype)
    out_dtype_v = xv.dtype
    out_dtype_a = xa.dtype

    def rup(a, m):
        return ((a + m - 1) // m) * m

    # Row tile: as large as possible (amortize per-step overhead + weight
    # loads) while keeping >= min_grid_steps steps so v7x's two TensorCores
    # both get work on the "parallel" axis.  Always a multiple of 8 rows.
    tile_n = max(8, min(int(tile_n_max), rup(pl.cdiv(N, min_grid_steps), 8)))
    N_pad = rup(N, tile_n)
    if N_pad != N:
        # Padded rows produce garbage (sliced off below); there is no
        # row-axis reduction inside the kernel, so they cannot contaminate
        # real rows.
        xv = jnp.pad(xv, ((0, N_pad - N), (0, 0)))
        xa = jnp.pad(xa, ((0, N_pad - N), (0, 0)))
    grid = (N_pad // tile_n,)

    mats, biases = _pack_params(params_v, params_a, Dv, Da, mxu_dtype)
    H2 = mats[2].shape[1]            # packed hidden width (2 * hidden)

    def row_spec(d):
        return pl.BlockSpec((tile_n, d), lambda i: (i, 0))

    def const_spec(arr):
        nd = arr.ndim
        return pl.BlockSpec(arr.shape, lambda i, _nd=nd: (0,) * _nd)

    in_specs = ([row_spec(Dv), row_spec(Da)]
                + [const_spec(a) for a in mats]
                + [const_spec(a) for a in biases])
    out_specs = (row_spec(Dv), row_spec(Da))
    out_shape = (jax.ShapeDtypeStruct((N_pad, Dv), out_dtype_v),
                 jax.ShapeDtypeStruct((N_pad, Da), out_dtype_a))

    # advisory cost estimate for XLA's scheduler
    macs_per_row = 3 * K * K + 4 * K * H2
    flops = 2 * N_pad * macs_per_row
    transcendentals = 2 * N_pad * K                   # tanh (gelu) + exp (sigmoid)
    weight_bytes = sum(int(a.size) * a.dtype.itemsize for a in (mats + biases))
    act_bytes = N_pad * K * (xv.dtype.itemsize
                             + jnp.dtype(out_dtype_v).itemsize)
    cost = pl.CostEstimate(flops=flops, transcendentals=transcendentals,
                           bytes_accessed=act_bytes + weight_bytes)

    kernel = functools.partial(_enhance_kernel, mxu_dtype=mxu_dtype)

    ov, oa = pl.pallas_call(
        kernel,
        grid=grid,
        in_specs=in_specs,
        out_specs=out_specs,
        out_shape=out_shape,
        compiler_params=pltpu.CompilerParams(
            dimension_semantics=("parallel",),         # megacore-shardable
            vmem_limit_bytes=48 * 1024 * 1024),        # <= v7x 64 MiB/TC
        cost_estimate=cost,
    )(xv, xa, *mats, *biases)

    O_v = ov[:N].reshape(B, T, Dv)
    O_a = oa[:N].reshape(B, T, Da)
    return O_v, O_a


# ----------------------------------------------------------------------------
# deterministic parameter construction
# ----------------------------------------------------------------------------
def init_modality_params(key, d, d_other, splits, hidden):
    ks = jax.random.split(key, 8)

    def norm(k, shape, fan_in):
        return jax.random.normal(k, shape, jnp.float32) * (1.0 / math.sqrt(fan_in))

    # block-diagonal "decompose" weight: one independent linear per split
    wdec = jnp.zeros((d, d), jnp.float32)
    off = 0
    for i, s in enumerate(splits):
        blk = norm(jax.random.fold_in(ks[0], i), (s, s), s)
        wdec = wdec.at[off:off + s, off:off + s].set(blk)
        off += s
    wcross = norm(ks[1], (d_other, d), d_other)
    bdec = jnp.zeros((1, d), jnp.float32)

    wg = norm(ks[2], (d, d), d)
    bg = jnp.zeros((1, d), jnp.float32)
    ws = norm(ks[3], (d, d), d)
    bs = jnp.zeros((1, d), jnp.float32)

    w1 = norm(ks[4], (d, hidden), d)
    b1 = jnp.zeros((1, hidden), jnp.float32)
    w2 = norm(ks[5], (hidden, d), hidden)
    b2 = jnp.zeros((1, d), jnp.float32)
    w3 = norm(ks[6], (d, hidden), d)
    b3 = jnp.zeros((1, hidden), jnp.float32)
    w4 = norm(ks[7], (hidden, d), hidden)
    b4 = jnp.zeros((1, d), jnp.float32)

    return (wdec, wcross, bdec, wg, bg, ws, bs,
            w1, b1, w2, b2, w3, b3, w4, b4)


# ----------------------------------------------------------------------------
# pure-JAX references (original, unfused per-modality math)
# ----------------------------------------------------------------------------
def _modality_reference(x, x_other, params, mxu_dtype):
    (wdec, wcross, bdec, wg, bg, ws, bs,
     w1, b1, w2, b2, w3, b3, w4, b4) = params
    f32 = jnp.float32

    def mm(a, w):
        return jnp.dot(a.astype(mxu_dtype), w.astype(mxu_dtype),
                       preferred_element_type=f32)

    dec = _gelu(mm(x, wdec) + mm(x_other, wcross) + bdec)
    gate = jax.nn.sigmoid(mm(x, wg) + bg)
    simple = gate * (mm(x, ws) + bs)
    z1 = dec + simple
    h1 = jnp.maximum(mm(z1, w1) + b1, 0.0)
    h = mm(h1, w2) + b2
    z2 = h + x
    h2 = jnp.maximum(mm(z2, w3) + b3, 0.0)
    return mm(h2, w4) + b4


def reference(X_v, X_a, params_v, params_a, mxu_dtype=jnp.float32):
    B, T, Dv = X_v.shape
    _, _, Da = X_a.shape
    xv = X_v.reshape(B * T, Dv).astype(jnp.float32)
    xa = X_a.reshape(B * T, Da).astype(jnp.float32)
    ov = _modality_reference(xv, xa, params_v, mxu_dtype)
    oa = _modality_reference(xa, xv, params_a, mxu_dtype)
    return ov.reshape(B, T, Dv), oa.reshape(B, T, Da)


# ----------------------------------------------------------------------------
if __name__ == "__main__":
    key = jax.random.PRNGKey(0)
    k_xv, k_xa, k_pv, k_pa = jax.random.split(key, 4)

    # split_rate: vision = [16, 16] -> Dv = 32 ; audio = [8, 8] -> Da = 16
    split_v, split_a = [16, 16], [8, 8]
    Dv, Da = sum(split_v), sum(split_a)
    hidden = 64                     # LateFFN hidden width (-> 128 packed lanes)
    B, T = 2, 8

    X_v = jax.random.normal(k_xv, (B, T, Dv), jnp.float32)
    X_a = jax.random.normal(k_xa, (B, T, Da), jnp.float32)

    params_v = init_modality_params(k_pv, Dv, Da, split_v, hidden)
    params_a = init_modality_params(k_pa, Da, Dv, split_a, hidden)

    O_v, O_a = enhance_net_v3(X_v, X_a, params_v, params_a)
    O_v = jax.block_until_ready(O_v)
    O_a = jax.block_until_ready(O_a)
    assert O_v.shape == (B, T, Dv) and O_a.shape == (B, T, Da)
    assert O_v.dtype == X_v.dtype and O_a.dtype == X_a.dtype

    # tight check vs. an unfused reference that mirrors the kernel's bf16 MXU
    # operands (verifies the packed/split weight layout is exact).
    Rb_v, Rb_a = reference(X_v, X_a, params_v, params_a, mxu_dtype=jnp.bfloat16)
    assert jnp.allclose(O_v, Rb_v, atol=2e-2, rtol=2e-2)
    assert jnp.allclose(O_a, Rb_a, atol=2e-2, rtol=2e-2)

    # loose check vs. the pure-f32 semantics (bounds bf16 drift).
    Rf_v, Rf_a = reference(X_v, X_a, params_v, params_a, mxu_dtype=jnp.float32)
    assert jnp.allclose(O_v, Rf_v, atol=2e-1, rtol=2e-1)
    assert jnp.allclose(O_a, Rf_a, atol=2e-1, rtol=2e-1)

    print("KERNEL_OK")
</pallas_src>

<mosaic_0001>
module attributes {stable_mosaic.version = 11 : i64} {
  func.func @_enhance_kernel(%arg0: i32, %arg1: memref<8x32xf32, #tpu.memory_space<vmem>>, %arg2: memref<8x16xf32, #tpu.memory_space<vmem>>, %arg3: memref<3x32x48xbf16, #tpu.memory_space<vmem>>, %arg4: memref<3x16x48xbf16, #tpu.memory_space<vmem>>, %arg5: memref<48x128xbf16, #tpu.memory_space<vmem>>, %arg6: memref<32x128xbf16, #tpu.memory_space<vmem>>, %arg7: memref<16x128xbf16, #tpu.memory_space<vmem>>, %arg8: memref<2x128x32xbf16, #tpu.memory_space<vmem>>, %arg9: memref<2x128x16xbf16, #tpu.memory_space<vmem>>, %arg10: memref<3x1x48xf32, #tpu.memory_space<vmem>>, %arg11: memref<2x1x128xf32, #tpu.memory_space<vmem>>, %arg12: memref<2x1x32xf32, #tpu.memory_space<vmem>>, %arg13: memref<2x1x16xf32, #tpu.memory_space<vmem>>, %arg14: memref<8x32xf32, #tpu.memory_space<vmem>>, %arg15: memref<8x16xf32, #tpu.memory_space<vmem>>) attributes {dimension_semantics = [#tpu.dimension_semantics<parallel>], iteration_bounds = array<i64: 2>, scalar_prefetch = 0 : i64, scratch_operands = 0 : i64, tpu.core_type = #tpu.core_type<tc>, window_params = [{transform_indices = @transform_0, window_bounds = array<i64: 8, 32>}, {transform_indices = @transform_1, window_bounds = array<i64: 8, 16>}, {pipeline_mode = #tpu.pipeline_mode<synchronous>, transform_indices = @transform_2, window_bounds = array<i64: 3, 32, 48>}, {pipeline_mode = #tpu.pipeline_mode<synchronous>, transform_indices = @transform_3, window_bounds = array<i64: 3, 16, 48>}, {pipeline_mode = #tpu.pipeline_mode<synchronous>, transform_indices = @transform_4, window_bounds = array<i64: 48, 128>}, {pipeline_mode = #tpu.pipeline_mode<synchronous>, transform_indices = @transform_5, window_bounds = array<i64: 32, 128>}, {pipeline_mode = #tpu.pipeline_mode<synchronous>, transform_indices = @transform_6, window_bounds = array<i64: 16, 128>}, {pipeline_mode = #tpu.pipeline_mode<synchronous>, transform_indices = @transform_7, window_bounds = array<i64: 2, 128, 32>}, {pipeline_mode = #tpu.pipeline_mode<synchronous>, transform_indices = @transform_8, window_bounds = array<i64: 2, 128, 16>}, {pipeline_mode = #tpu.pipeline_mode<synchronous>, transform_indices = @transform_9, window_bounds = array<i64: 3, 1, 48>}, {pipeline_mode = #tpu.pipeline_mode<synchronous>, transform_indices = @transform_10, window_bounds = array<i64: 2, 1, 128>}, {pipeline_mode = #tpu.pipeline_mode<synchronous>, transform_indices = @transform_11, window_bounds = array<i64: 2, 1, 32>}, {pipeline_mode = #tpu.pipeline_mode<synchronous>, transform_indices = @transform_12, window_bounds = array<i64: 2, 1, 16>}, {transform_indices = @transform_13, window_bounds = array<i64: 8, 32>}, {transform_indices = @transform_14, window_bounds = array<i64: 8, 16>}]} {
    %c0 = arith.constant 0 : index
    %c0_0 = arith.constant 0 : index
    %0 = vector.load %arg1[%c0, %c0_0] : memref<8x32xf32, #tpu.memory_space<vmem>>, vector<8x32xf32>
    %c0_1 = arith.constant 0 : index
    %c0_2 = arith.constant 0 : index
    %1 = vector.load %arg2[%c0_1, %c0_2] : memref<8x16xf32, #tpu.memory_space<vmem>>, vector<8x16xf32>
    %2 = arith.truncf %0 : vector<8x32xf32> to vector<8x32xbf16>
    %3 = arith.truncf %1 : vector<8x16xf32> to vector<8x16xbf16>
    %c0_3 = arith.constant 0 : index
    %c0_4 = arith.constant 0 : index
    %c0_5 = arith.constant 0 : index
    %4 = vector.load %arg3[%c0_3, %c0_4, %c0_5] : memref<3x32x48xbf16, #tpu.memory_space<vmem>>, vector<1x32x48xbf16>
    %5 = vector.shape_cast %4 : vector<1x32x48xbf16> to vector<32x48xbf16>
    %cst = arith.constant dense<0.000000e+00> : vector<8x48xf32>
    %6 = tpu.matmul %2, %5, %cst {dimension_numbers = #tpu.dot_dimension_numbers<[1], [0], [0], [1], [0, 0, 1, 1], [], []>} : vector<8x32xbf16>, vector<32x48xbf16>, vector<8x48xf32> -> vector<8x48xf32>
    %c0_6 = arith.constant 0 : index
    %c0_7 = arith.constant 0 : index
    %c0_8 = arith.constant 0 : index
    %7 = vector.load %arg4[%c0_6, %c0_7, %c0_8] : memref<3x16x48xbf16, #tpu.memory_space<vmem>>, vector<1x16x48xbf16>
    %8 = vector.shape_cast %7 : vector<1x16x48xbf16> to vector<16x48xbf16>
    %cst_9 = arith.constant dense<0.000000e+00> : vector<8x48xf32>
    %9 = tpu.matmul %3, %8, %cst_9 {dimension_numbers = #tpu.dot_dimension_numbers<[1], [0], [0], [1], [0, 0, 1, 1], [], []>} : vector<8x16xbf16>, vector<16x48xbf16>, vector<8x48xf32> -> vector<8x48xf32>
    %10 = arith.addf %6, %9 : vector<8x48xf32>
    %c0_10 = arith.constant 0 : index
    %c0_11 = arith.constant 0 : index
    %c0_12 = arith.constant 0 : index
    %11 = vector.load %arg10[%c0_10, %c0_11, %c0_12] : memref<3x1x48xf32, #tpu.memory_space<vmem>>, vector<1x1x48xf32>
    %12 = vector.shape_cast %11 : vector<1x1x48xf32> to vector<1x48xf32>
    %13 = vector.broadcast %12 : vector<1x48xf32> to vector<8x48xf32>
    %14 = arith.addf %10, %13 : vector<8x48xf32>
    %cst_13 = arith.constant 5.000000e-01 : f32
    %15 = vector.broadcast %cst_13 : f32 to vector<8x48xf32>
    %16 = arith.mulf %15, %14 : vector<8x48xf32>
    %cst_14 = arith.constant 4.471500e-02 : f32
    %17 = vector.broadcast %cst_14 : f32 to vector<8x48xf32>
    %18 = arith.mulf %17, %14 : vector<8x48xf32>
    %19 = arith.mulf %18, %14 : vector<8x48xf32>
    %20 = arith.mulf %19, %14 : vector<8x48xf32>
    %21 = arith.addf %14, %20 : vector<8x48xf32>
    %cst_15 = arith.constant 0.797884583 : f32
    %22 = vector.broadcast %cst_15 : f32 to vector<8x48xf32>
    %23 = arith.mulf %22, %21 : vector<8x48xf32>
    %24 = math.tanh %23 : vector<8x48xf32>
    %cst_16 = arith.constant 1.000000e+00 : f32
    %25 = vector.broadcast %cst_16 : f32 to vector<8x48xf32>
    %26 = arith.addf %25, %24 : vector<8x48xf32>
    %27 = arith.mulf %16, %26 : vector<8x48xf32>
    %c1 = arith.constant 1 : index
    %c0_17 = arith.constant 0 : index
    %c0_18 = arith.constant 0 : index
    %28 = vector.load %arg3[%c1, %c0_17, %c0_18] : memref<3x32x48xbf16, #tpu.memory_space<vmem>>, vector<1x32x48xbf16>
    %29 = vector.shape_cast %28 : vector<1x32x48xbf16> to vector<32x48xbf16>
    %cst_19 = arith.constant dense<0.000000e+00> : vector<8x48xf32>
    %30 = tpu.matmul %2, %29, %cst_19 {dimension_numbers = #tpu.dot_dimension_numbers<[1], [0], [0], [1], [0, 0, 1, 1], [], []>} : vector<8x32xbf16>, vector<32x48xbf16>, vector<8x48xf32> -> vector<8x48xf32>
    %c1_20 = arith.constant 1 : index
    %c0_21 = arith.constant 0 : index
    %c0_22 = arith.constant 0 : index
    %31 = vector.load %arg4[%c1_20, %c0_21, %c0_22] : memref<3x16x48xbf16, #tpu.memory_space<vmem>>, vector<1x16x48xbf16>
    %32 = vector.shape_cast %31 : vector<1x16x48xbf16> to vector<16x48xbf16>
    %cst_23 = arith.constant dense<0.000000e+00> : vector<8x48xf32>
    %33 = tpu.matmul %3, %32, %cst_23 {dimension_numbers = #tpu.dot_dimension_numbers<[1], [0], [0], [1], [0, 0, 1, 1], [], []>} : vector<8x16xbf16>, vector<16x48xbf16>, vector<8x48xf32> -> vector<8x48xf32>
    %34 = arith.addf %30, %33 : vector<8x48xf32>
    %c1_24 = arith.constant 1 : index
    %c0_25 = arith.constant 0 : index
    %c0_26 = arith.constant 0 : index
    %35 = vector.load %arg10[%c1_24, %c0_25, %c0_26] : memref<3x1x48xf32, #tpu.memory_space<vmem>>, vector<1x1x48xf32>
    %36 = vector.shape_cast %35 : vector<1x1x48xf32> to vector<1x48xf32>
    %37 = vector.broadcast %36 : vector<1x48xf32> to vector<8x48xf32>
    %38 = arith.addf %34, %37 : vector<8x48xf32>
    %39 = arith.negf %38 : vector<8x48xf32>
    %40 = math.exp %39 : vector<8x48xf32>
    %cst_27 = arith.constant 1.000000e+00 : f32
    %41 = vector.broadcast %cst_27 : f32 to vector<8x48xf32>
    %42 = arith.addf %41, %40 : vector<8x48xf32>
    %43 = arith.divf %41, %42 : vector<8x48xf32>
    %c2 = arith.constant 2 : index
    %c0_28 = arith.constant 0 : index
    %c0_29 = arith.constant 0 : index
    %44 = vector.load %arg3[%c2, %c0_28, %c0_29] : memref<3x32x48xbf16, #tpu.memory_space<vmem>>, vector<1x32x48xbf16>
    %45 = vector.shape_cast %44 : vector<1x32x48xbf16> to vector<32x48xbf16>
    %cst_30 = arith.constant dense<0.000000e+00> : vector<8x48xf32>
    %46 = tpu.matmul %2, %45, %cst_30 {dimension_numbers = #tpu.dot_dimension_numbers<[1], [0], [0], [1], [0, 0, 1, 1], [], []>} : vector<8x32xbf16>, vector<32x48xbf16>, vector<8x48xf32> -> vector<8x48xf32>
    %c2_31 = arith.constant 2 : index
    %c0_32 = arith.constant 0 : index
    %c0_33 = arith.constant 0 : index
    %47 = vector.load %arg4[%c2_31, %c0_32, %c0_33] : memref<3x16x48xbf16, #tpu.memory_space<vmem>>, vector<1x16x48xbf16>
    %48 = vector.shape_cast %47 : vector<1x16x48xbf16> to vector<16x48xbf16>
    %cst_34 = arith.constant dense<0.000000e+00> : vector<8x48xf32>
    %49 = tpu.matmul %3, %48, %cst_34 {dimension_numbers = #tpu.dot_dimension_numbers<[1], [0], [0], [1], [0, 0, 1, 1], [], []>} : vector<8x16xbf16>, vector<16x48xbf16>, vector<8x48xf32> -> vector<8x48xf32>
    %50 = arith.addf %46, %49 : vector<8x48xf32>
    %c2_35 = arith.constant 2 : index
    %c0_36 = arith.constant 0 : index
    %c0_37 = arith.constant 0 : index
    %51 = vector.load %arg10[%c2_35, %c0_36, %c0_37] : memref<3x1x48xf32, #tpu.memory_space<vmem>>, vector<1x1x48xf32>
    %52 = vector.shape_cast %51 : vector<1x1x48xf32> to vector<1x48xf32>
    %53 = vector.broadcast %52 : vector<1x48xf32> to vector<8x48xf32>
    %54 = arith.addf %50, %53 : vector<8x48xf32>
    %55 = arith.mulf %43, %54 : vector<8x48xf32>
    %56 = arith.addf %27, %55 : vector<8x48xf32>
    %57 = arith.truncf %56 : vector<8x48xf32> to vector<8x48xbf16>
    %c0_38 = arith.constant 0 : index
    %c0_39 = arith.constant 0 : index
    %58 = vector.load %arg5[%c0_38, %c0_39] : memref<48x128xbf16, #tpu.memory_space<vmem>>, vector<48x128xbf16>
    %cst_40 = arith.constant dense<0.000000e+00> : vector<8x128xf32>
    %59 = tpu.matmul %57, %58, %cst_40 {dimension_numbers = #tpu.dot_dimension_numbers<[1], [0], [0], [1], [0, 0, 1, 1], [], []>} : vector<8x48xbf16>, vector<48x128xbf16>, vector<8x128xf32> -> vector<8x128xf32>
    %c0_41 = arith.constant 0 : index
    %c0_42 = arith.constant 0 : index
    %c0_43 = arith.constant 0 : index
    %60 = vector.load %arg11[%c0_41, %c0_42, %c0_43] : memref<2x1x128xf32, #tpu.memory_space<vmem>>, vector<1x1x128xf32>
    %61 = vector.shape_cast %60 : vector<1x1x128xf32> to vector<1x128xf32>
    %62 = vector.broadcast %61 : vector<1x128xf32> to vector<8x128xf32>
    %63 = arith.addf %59, %62 : vector<8x128xf32>
    %cst_44 = arith.constant 0.000000e+00 : f32
    %64 = vector.broadcast %cst_44 : f32 to vector<8x128xf32>
    %65 = arith.maximumf %63, %64 : vector<8x128xf32>
    %66 = arith.truncf %65 : vector<8x128xf32> to vector<8x128xbf16>
    %c0_45 = arith.constant 0 : index
    %c0_46 = arith.constant 0 : index
    %c0_47 = arith.constant 0 : index
    %67 = vector.load %arg8[%c0_45, %c0_46, %c0_47] : memref<2x128x32xbf16, #tpu.memory_space<vmem>>, vector<1x128x32xbf16>
    %68 = vector.shape_cast %67 : vector<1x128x32xbf16> to vector<128x32xbf16>
    %cst_48 = arith.constant dense<0.000000e+00> : vector<8x32xf32>
    %69 = tpu.matmul %66, %68, %cst_48 {dimension_numbers = #tpu.dot_dimension_numbers<[1], [0], [0], [1], [0, 0, 1, 1], [], []>} : vector<8x128xbf16>, vector<128x32xbf16>, vector<8x32xf32> -> vector<8x32xf32>
    %c0_49 = arith.constant 0 : index
    %c0_50 = arith.constant 0 : index
    %c0_51 = arith.constant 0 : index
    %70 = vector.load %arg12[%c0_49, %c0_50, %c0_51] : memref<2x1x32xf32, #tpu.memory_space<vmem>>, vector<1x1x32xf32>
    %71 = vector.shape_cast %70 : vector<1x1x32xf32> to vector<1x32xf32>
    %72 = vector.broadcast %71 : vector<1x32xf32> to vector<8x32xf32>
    %73 = arith.addf %69, %72 : vector<8x32xf32>
    %c0_52 = arith.constant 0 : index
    %c0_53 = arith.constant 0 : index
    %c0_54 = arith.constant 0 : index
    %74 = vector.load %arg9[%c0_52, %c0_53, %c0_54] : memref<2x128x16xbf16, #tpu.memory_space<vmem>>, vector<1x128x16xbf16>
    %75 = vector.shape_cast %74 : vector<1x128x16xbf16> to vector<128x16xbf16>
    %cst_55 = arith.constant dense<0.000000e+00> : vector<8x16xf32>
    %76 = tpu.matmul %66, %75, %cst_55 {dimension_numbers = #tpu.dot_dimension_numbers<[1], [0], [0], [1], [0, 0, 1, 1], [], []>} : vector<8x128xbf16>, vector<128x16xbf16>, vector<8x16xf32> -> vector<8x16xf32>
    %c0_56 = arith.constant 0 : index
    %c0_57 = arith.constant 0 : index
    %c0_58 = arith.constant 0 : index
    %77 = vector.load %arg13[%c0_56, %c0_57, %c0_58] : memref<2x1x16xf32, #tpu.memory_space<vmem>>, vector<1x1x16xf32>
    %78 = vector.shape_cast %77 : vector<1x1x16xf32> to vector<1x16xf32>
    %79 = vector.broadcast %78 : vector<1x16xf32> to vector<8x16xf32>
    %80 = arith.addf %76, %79 : vector<8x16xf32>
    %81 = arith.addf %73, %0 : vector<8x32xf32>
    %82 = arith.truncf %81 : vector<8x32xf32> to vector<8x32xbf16>
    %83 = arith.addf %80, %1 : vector<8x16xf32>
    %84 = arith.truncf %83 : vector<8x16xf32> to vector<8x16xbf16>
    %c0_59 = arith.constant 0 : index
    %c0_60 = arith.constant 0 : index
    %85 = vector.load %arg6[%c0_59, %c0_60] : memref<32x128xbf16, #tpu.memory_space<vmem>>, vector<32x128xbf16>
    %cst_61 = arith.constant dense<0.000000e+00> : vector<8x128xf32>
    %86 = tpu.matmul %82, %85, %cst_61 {dimension_numbers = #tpu.dot_dimension_numbers<[1], [0], [0], [1], [0, 0, 1, 1], [], []>} : vector<8x32xbf16>, vector<32x128xbf16>, vector<8x128xf32> -> vector<8x128xf32>
    %c0_62 = arith.constant 0 : index
    %c0_63 = arith.constant 0 : index
    %87 = vector.load %arg7[%c0_62, %c0_63] : memref<16x128xbf16, #tpu.memory_space<vmem>>, vector<16x128xbf16>
    %cst_64 = arith.constant dense<0.000000e+00> : vector<8x128xf32>
    %88 = tpu.matmul %84, %87, %cst_64 {dimension_numbers = #tpu.dot_dimension_numbers<[1], [0], [0], [1], [0, 0, 1, 1], [], []>} : vector<8x16xbf16>, vector<16x128xbf16>, vector<8x128xf32> -> vector<8x128xf32>
    %89 = arith.addf %86, %88 : vector<8x128xf32>
    %c1_65 = arith.constant 1 : index
    %c0_66 = arith.constant 0 : index
    %c0_67 = arith.constant 0 : index
    %90 = vector.load %arg11[%c1_65, %c0_66, %c0_67] : memref<2x1x128xf32, #tpu.memory_space<vmem>>, vector<1x1x128xf32>
    %91 = vector.shape_cast %90 : vector<1x1x128xf32> to vector<1x128xf32>
    %92 = vector.broadcast %91 : vector<1x128xf32> to vector<8x128xf32>
    %93 = arith.addf %89, %92 : vector<8x128xf32>
    %cst_68 = arith.constant 0.000000e+00 : f32
    %94 = vector.broadcast %cst_68 : f32 to vector<8x128xf32>
    %95 = arith.maximumf %93, %94 : vector<8x128xf32>
    %96 = arith.truncf %95 : vector<8x128xf32> to vector<8x128xbf16>
    %c1_69 = arith.constant 1 : index
    %c0_70 = arith.constant 0 : index
    %c0_71 = arith.constant 0 : index
    %97 = vector.load %arg8[%c1_69, %c0_70, %c0_71] : memref<2x128x32xbf16, #tpu.memory_space<vmem>>, vector<1x128x32xbf16>
    %98 = vector.shape_cast %97 : vector<1x128x32xbf16> to vector<128x32xbf16>
    %cst_72 = arith.constant dense<0.000000e+00> : vector<8x32xf32>
    %99 = tpu.matmul %96, %98, %cst_72 {dimension_numbers = #tpu.dot_dimension_numbers<[1], [0], [0], [1], [0, 0, 1, 1], [], []>} : vector<8x128xbf16>, vector<128x32xbf16>, vector<8x32xf32> -> vector<8x32xf32>
    %c1_73 = arith.constant 1 : index
    %c0_74 = arith.constant 0 : index
    %c0_75 = arith.constant 0 : index
    %100 = vector.load %arg12[%c1_73, %c0_74, %c0_75] : memref<2x1x32xf32, #tpu.memory_space<vmem>>, vector<1x1x32xf32>
    %101 = vector.shape_cast %100 : vector<1x1x32xf32> to vector<1x32xf32>
    %102 = vector.broadcast %101 : vector<1x32xf32> to vector<8x32xf32>
    %103 = arith.addf %99, %102 : vector<8x32xf32>
    %c1_76 = arith.constant 1 : index
    %c0_77 = arith.constant 0 : index
    %c0_78 = arith.constant 0 : index
    %104 = vector.load %arg9[%c1_76, %c0_77, %c0_78] : memref<2x128x16xbf16, #tpu.memory_space<vmem>>, vector<1x128x16xbf16>
    %105 = vector.shape_cast %104 : vector<1x128x16xbf16> to vector<128x16xbf16>
    %cst_79 = arith.constant dense<0.000000e+00> : vector<8x16xf32>
    %106 = tpu.matmul %96, %105, %cst_79 {dimension_numbers = #tpu.dot_dimension_numbers<[1], [0], [0], [1], [0, 0, 1, 1], [], []>} : vector<8x128xbf16>, vector<128x16xbf16>, vector<8x16xf32> -> vector<8x16xf32>
    %c1_80 = arith.constant 1 : index
    %c0_81 = arith.constant 0 : index
    %c0_82 = arith.constant 0 : index
    %107 = vector.load %arg13[%c1_80, %c0_81, %c0_82] : memref<2x1x16xf32, #tpu.memory_space<vmem>>, vector<1x1x16xf32>
    %108 = vector.shape_cast %107 : vector<1x1x16xf32> to vector<1x16xf32>
    %109 = vector.broadcast %108 : vector<1x16xf32> to vector<8x16xf32>
    %110 = arith.addf %106, %109 : vector<8x16xf32>
    %c0_83 = arith.constant 0 : index
    %c0_84 = arith.constant 0 : index
    %111 = vector.load %arg14[%c0_83, %c0_84] : memref<8x32xf32, #tpu.memory_space<vmem>>, vector<8x32xf32>
    tpu.vector_store %arg14[%c0_83, %c0_84], %103 {strides = array<i32>} : memref<8x32xf32, #tpu.memory_space<vmem>>, vector<8x32xf32>,
    %c0_85 = arith.constant 0 : index
    %c0_86 = arith.constant 0 : index
    %112 = vector.load %arg15[%c0_85, %c0_86] : memref<8x16xf32, #tpu.memory_space<vmem>>, vector<8x16xf32>
    tpu.vector_store %arg15[%c0_85, %c0_86], %110 {strides = array<i32>} : memref<8x16xf32, #tpu.memory_space<vmem>>, vector<8x16xf32>,
    return
  }
  func.func @transform_0(%arg0: i32) -> (i32, i32) {
    %c0_i32 = arith.constant 0 : i32
    %c0_i32_0 = arith.constant 0 : i32
    return %arg0, %c0_i32 : i32, i32
  }
  func.func @transform_1(%arg0: i32) -> (i32, i32) {
    %c0_i32 = arith.constant 0 : i32
    %c0_i32_0 = arith.constant 0 : i32
    return %arg0, %c0_i32 : i32, i32
  }
  func.func @transform_2(%arg0: i32) -> (i32, i32, i32) {
    %c0_i32 = arith.constant 0 : i32
    %c0_i32_0 = arith.constant 0 : i32
    %c0_i32_1 = arith.constant 0 : i32
    %c0_i32_2 = arith.constant 0 : i32
    return %c0_i32, %c0_i32_0, %c0_i32_1 : i32, i32, i32
  }
  func.func @transform_3(%arg0: i32) -> (i32, i32, i32) {
    %c0_i32 = arith.constant 0 : i32
    %c0_i32_0 = arith.constant 0 : i32
    %c0_i32_1 = arith.constant 0 : i32
    %c0_i32_2 = arith.constant 0 : i32
    return %c0_i32, %c0_i32_0, %c0_i32_1 : i32, i32, i32
  }
  func.func @transform_4(%arg0: i32) -> (i32, i32) {
    %c0_i32 = arith.constant 0 : i32
    %c0_i32_0 = arith.constant 0 : i32
    %c0_i32_1 = arith.constant 0 : i32
    return %c0_i32, %c0_i32_0 : i32, i32
  }
  func.func @transform_5(%arg0: i32) -> (i32, i32) {
    %c0_i32 = arith.constant 0 : i32
    %c0_i32_0 = arith.constant 0 : i32
    %c0_i32_1 = arith.constant 0 : i32
    return %c0_i32, %c0_i32_0 : i32, i32
  }
  func.func @transform_6(%arg0: i32) -> (i32, i32) {
    %c0_i32 = arith.constant 0 : i32
    %c0_i32_0 = arith.constant 0 : i32
    %c0_i32_1 = arith.constant 0 : i32
    return %c0_i32, %c0_i32_0 : i32, i32
  }
  func.func @transform_7(%arg0: i32) -> (i32, i32, i32) {
    %c0_i32 = arith.constant 0 : i32
    %c0_i32_0 = arith.constant 0 : i32
    %c0_i32_1 = arith.constant 0 : i32
    %c0_i32_2 = arith.constant 0 : i32
    return %c0_i32, %c0_i32_0, %c0_i32_1 : i32, i32, i32
  }
  func.func @transform_8(%arg0: i32) -> (i32, i32, i32) {
    %c0_i32 = arith.constant 0 : i32
    %c0_i32_0 = arith.constant 0 : i32
    %c0_i32_1 = arith.constant 0 : i32
    %c0_i32_2 = arith.constant 0 : i32
    return %c0_i32, %c0_i32_0, %c0_i32_1 : i32, i32, i32
  }
  func.func @transform_9(%arg0: i32) -> (i32, i32, i32) {
    %c0_i32 = arith.constant 0 : i32
    %c0_i32_0 = arith.constant 0 : i32
    %c0_i32_1 = arith.constant 0 : i32
    %c0_i32_2 = arith.constant 0 : i32
    return %c0_i32, %c0_i32_0, %c0_i32_1 : i32, i32, i32
  }
  func.func @transform_10(%arg0: i32) -> (i32, i32, i32) {
    %c0_i32 = arith.constant 0 : i32
    %c0_i32_0 = arith.constant 0 : i32
    %c0_i32_1 = arith.constant 0 : i32
    %c0_i32_2 = arith.constant 0 : i32
    return %c0_i32, %c0_i32_0, %c0_i32_1 : i32, i32, i32
  }
  func.func @transform_11(%arg0: i32) -> (i32, i32, i32) {
    %c0_i32 = arith.constant 0 : i32
    %c0_i32_0 = arith.constant 0 : i32
    %c0_i32_1 = arith.constant 0 : i32
    %c0_i32_2 = arith.constant 0 : i32
    return %c0_i32, %c0_i32_0, %c0_i32_1 : i32, i32, i32
  }
  func.func @transform_12(%arg0: i32) -> (i32, i32, i32) {
    %c0_i32 = arith.constant 0 : i32
    %c0_i32_0 = arith.constant 0 : i32
    %c0_i32_1 = arith.constant 0 : i32
    %c0_i32_2 = arith.constant 0 : i32
    return %c0_i32, %c0_i32_0, %c0_i32_1 : i32, i32, i32
  }
  func.func @transform_13(%arg0: i32) -> (i32, i32) {
    %c0_i32 = arith.constant 0 : i32
    %c0_i32_0 = arith.constant 0 : i32
    return %arg0, %c0_i32 : i32, i32
  }
  func.func @transform_14(%arg0: i32) -> (i32, i32) {
    %c0_i32 = arith.constant 0 : i32
    %c0_i32_0 = arith.constant 0 : i32
    return %arg0, %c0_i32 : i32, i32
  }
}

</mosaic_0001>

<llo_original>
// kernel: tpu_custom_call.1
$region0: #{tpu_custom_call.1}
  #allocation0 [shape = 'u32[]', space=smem, size = 0x4, offset = 0x4, fixed_abs, tag = 'smem constant byte address 0x4 - core index']
  #allocation1 [shape = 'u32[144,128]{1,0:T(1,128)}', space=vmem, size = 0x12000, scoped, tag = 'internal scratch']
  %s0 = inlined_call_operand.vmem [shape: f32[16,32], index: 0, kind: input, shape index: {}]
  %s1 = inlined_call_operand.vmem [shape: f32[16,16], index: 1, kind: input, shape index: {}]
  %s2 = inlined_call_operand.vmem [shape: bf16[3,32,48], index: 2, kind: input, shape index: {}]
  %s3 = inlined_call_operand.vmem [shape: bf16[3,16,48], index: 3, kind: input, shape index: {}]
  %s4 = inlined_call_operand.vmem [shape: bf16[48,128], index: 4, kind: input, shape index: {}]
  %s5 = inlined_call_operand.vmem [shape: bf16[32,128], index: 5, kind: input, shape index: {}]
  %s6 = inlined_call_operand.vmem [shape: bf16[16,128], index: 6, kind: input, shape index: {}]
  %s7 = inlined_call_operand.vmem [shape: bf16[2,128,32], index: 7, kind: input, shape index: {}]
  %s8 = inlined_call_operand.vmem [shape: bf16[2,128,16], index: 8, kind: input, shape index: {}]
  %s9 = inlined_call_operand.vmem [shape: f32[3,1,48], index: 9, kind: input, shape index: {}]
  %s10 = inlined_call_operand.vmem [shape: f32[2,1,128], index: 10, kind: input, shape index: {}]
  %s11 = inlined_call_operand.vmem [shape: f32[2,1,32], index: 11, kind: input, shape index: {}]
  %s12 = inlined_call_operand.vmem [shape: f32[2,1,16], index: 12, kind: input, shape index: {}]
  %s13 = inlined_call_operand.hbm [shape: f32[16,32], index: 13, kind: output, shape index: {0}]
  %s14 = inlined_call_operand.hbm [shape: f32[16,16], index: 14, kind: output, shape index: {1}]
  %15 = xla_tuple %s13, %s14
  %s16 = sld [smem:[#allocation0]]
  $region93: #{tpu_custom_call.1} parent=0
    _
  %s18 = ssub.s32 1, %s16
  %s19 = scalar_select 0, %s18, %s16
  $region1: #{tpu_custom_call.1} parent=0
    #allocation2 [shape = 'u8[8192]{0}', space=vmem, size = 0x2000, scoped, tag = 'output window, operand 0']
    #allocation3 [shape = 's32[2]{0}', space=sflag, size = 0x8, scoped, tag = 'scoped memory for tpu_custom_call.1']
    #allocation4 [shape = 'u8[8192]{0}', space=vmem, size = 0x2000, scoped, tag = 'output window, operand 1']
    #allocation5 [shape = 's32[2]{0}', space=sflag, size = 0x8, scoped, tag = 'scoped memory for tpu_custom_call.1']
    %20 = vsyncpa [#allocation3], 0
    %s21 = scalar_lea.sflag [#allocation3], 1
    %22 = vsyncpa %s21, 0
    %23 = vsyncpa [#allocation5], 0
    %s24 = scalar_lea.sflag [#allocation5], 1
    %25 = vsyncpa %s24, 0
    loop: start=0, step=1, limit=4
    $region2: #{tpu_custom_call.1} parent=1 // loop_pre_header
      _
    $region3: #{tpu_custom_call.1} parent=1 // loop_header
      %s27 = sphi 0, %s31
      %p28 = scmp.ge.s32.totalorder %s27, 4
      %s37 = sphi 0, %s39
      %s40 = sphi 0, %s37
      %s41 = sphi 0, %s40
      %s57 = sphi 0, %s41
      %s63 = sphi 0, %s65
      %s66 = sphi 0, %s63
      %s67 = sphi 0, %s66
      %s83 = sphi 0, %s67
      %s87 = sphi 0, %s87
      %s89 = sphi 0, %s87
      %s90 = sphi 0, %s89
      %s104 = sphi 0, %s90
      %s108 = sphi 0, %s108
      %s110 = sphi 0, %s108
      %s111 = sphi 0, %s110
      %s125 = sphi 0, %s111
      %s129 = sphi 0, %s129
      %s131 = sphi 0, %s129
      %s132 = sphi 0, %s131
      %s146 = sphi 0, %s132
      %s150 = sphi 0, %s150
      %s152 = sphi 0, %s150
      %s153 = sphi 0, %s152
      %s167 = sphi 0, %s153
      %s171 = sphi 0, %s171
      %s173 = sphi 0, %s171
      %s174 = sphi 0, %s173
      %s188 = sphi 0, %s174
      %s192 = sphi 0, %s192
      %s194 = sphi 0, %s192
      %s195 = sphi 0, %s194
      %s209 = sphi 0, %s195
      %s213 = sphi 0, %s213
      %s215 = sphi 0, %s213
      %s216 = sphi 0, %s215
      %s230 = sphi 0, %s216
      %s234 = sphi 0, %s234
      %s236 = sphi 0, %s234
      %s237 = sphi 0, %s236
      %s251 = sphi 0, %s237
      %s255 = sphi 0, %s255
      %s257 = sphi 0, %s255
      %s258 = sphi 0, %s257
      %s272 = sphi 0, %s258
      %s276 = sphi 0, %s276
      %s278 = sphi 0, %s276
      %s279 = sphi 0, %s278
      %s293 = sphi 0, %s279
      %s297 = sphi 0, %s297
      %s299 = sphi 0, %s297
      %s300 = sphi 0, %s299
      %s314 = sphi 0, %s300
      %s320 = sphi 0, %s322
      %s323 = sphi 0, %s320
      %s324 = sphi 0, %s323
      %s340 = sphi 0, %s324
      %s346 = sphi 0, %s348
      %s349 = sphi 0, %s346
      %s350 = sphi 0, %s349
      %s366 = sphi 0, %s350
    $region4: #{tpu_custom_call.1} parent=1 // loop_header_branch
      %30 = sbr.rel (%p28) target = $region8
    $region5: #{tpu_custom_call.1} parent=1 // loop_body
      %s32 = ssub.s32 %s27, 1
      %s33 = ssub.s32 %s27, 2
      %s34 = sadd.s32 %s27, 1
      %s35 = ssub.s32 %s27, %s34
      %p36 = scmp.eq.s32.totalorder %s35, 0
      %s38 = sadd.s32 %s37, 1
      %s39 = scalar_select %p36, %s37, %s38
      %p42 = pneg %p36
      %p43 = scmp.eq.s32.totalorder %s27, 1
      %p44 = por %p42, %p43
      %p45 = scmp.ne.s32.totalorder %s37, %s40
      %p46 = scmp.eq.s32.totalorder %s27, 0
      %p47 = por %p45, %p46
      %p48 = scmp.ne.s32.totalorder %s37, %s40
      %p49 = scmp.eq.s32.totalorder %s32, 1
      %p50 = por %p48, %p49
      %p51 = scmp.ne.s32.totalorder %s40, %s41
      %p52 = scmp.eq.s32.totalorder %s32, 0
      %p53 = por %p51, %p52
      %p54 = scmp.ne.s32.totalorder %s40, %s41
      %p55 = scmp.eq.s32.totalorder %s33, 1
      %p56 = por %p54, %p55
      %p58 = scmp.ne.s32.totalorder %s41, %s57
      %p59 = scmp.eq.s32.totalorder %s33, 0
      %p60 = por %p58, %p59
      %s61 = ssub.s32 %s27, %s34
      %p62 = scmp.eq.s32.totalorder %s61, 0
      %s64 = sadd.s32 %s63, 1
      %s65 = scalar_select %p62, %s63, %s64
      %p68 = pneg %p62
      %p69 = scmp.eq.s32.totalorder %s27, 1
      %p70 = por %p68, %p69
      %p71 = scmp.ne.s32.totalorder %s63, %s66
      %p72 = scmp.eq.s32.totalorder %s27, 0
      %p73 = por %p71, %p72
      %p74 = scmp.ne.s32.totalorder %s63, %s66
      %p75 = scmp.eq.s32.totalorder %s32, 1
      %p76 = por %p74, %p75
      %p77 = scmp.ne.s32.totalorder %s66, %s67
      %p78 = scmp.eq.s32.totalorder %s32, 0
      %p79 = por %p77, %p78
      %p80 = scmp.ne.s32.totalorder %s66, %s67
      %p81 = scmp.eq.s32.totalorder %s33, 1
      %p82 = por %p80, %p81
      %p84 = scmp.ne.s32.totalorder %s67, %s83
      %p85 = scmp.eq.s32.totalorder %s33, 0
      %p86 = por %p84, %p85
      %s88 = sadd.s32 %s87, 1
      %p91 = scmp.eq.s32.totalorder %s27, 1
      %p92 = scmp.ne.s32.totalorder %s87, %s89
      %p93 = scmp.eq.s32.totalorder %s27, 0
      %p94 = por %p92, %p93
      %p95 = scmp.ne.s32.totalorder %s87, %s89
      %p96 = scmp.eq.s32.totalorder %s32, 1
      %p97 = por %p95, %p96
      %p98 = scmp.ne.s32.totalorder %s89, %s90
      %p99 = scmp.eq.s32.totalorder %s32, 0
      %p100 = por %p98, %p99
      %p101 = scmp.ne.s32.totalorder %s89, %s90
      %p102 = scmp.eq.s32.totalorder %s33, 1
      %p103 = por %p101, %p102
      %p105 = scmp.ne.s32.totalorder %s90, %s104
      %p106 = scmp.eq.s32.totalorder %s33, 0
      %p107 = por %p105, %p106
      %s109 = sadd.s32 %s108, 1
      %p112 = scmp.eq.s32.totalorder %s27, 1
      %p113 = scmp.ne.s32.totalorder %s108, %s110
      %p114 = scmp.eq.s32.totalorder %s27, 0
      %p115 = por %p113, %p114
      %p116 = scmp.ne.s32.totalorder %s108, %s110
      %p117 = scmp.eq.s32.totalorder %s32, 1
      %p118 = por %p116, %p117
      %p119 = scmp.ne.s32.totalorder %s110, %s111
      %p120 = scmp.eq.s32.totalorder %s32, 0
      %p121 = por %p119, %p120
      %p122 = scmp.ne.s32.totalorder %s110, %s111
      %p123 = scmp.eq.s32.totalorder %s33, 1
      %p124 = por %p122, %p123
      %p126 = scmp.ne.s32.totalorder %s111, %s125
      %p127 = scmp.eq.s32.totalorder %s33, 0
      %p128 = por %p126, %p127
      %s130 = sadd.s32 %s129, 1
      %p133 = scmp.eq.s32.totalorder %s27, 1
      %p134 = scmp.ne.s32.totalorder %s129, %s131
      %p135 = scmp.eq.s32.totalorder %s27, 0
      %p136 = por %p134, %p135
      %p137 = scmp.ne.s32.totalorder %s129, %s131
      %p138 = scmp.eq.s32.totalorder %s32, 1
      %p139 = por %p137, %p138
      %p140 = scmp.ne.s32.totalorder %s131, %s132
      %p141 = scmp.eq.s32.totalorder %s32, 0
      %p142 = por %p140, %p141
      %p143 = scmp.ne.s32.totalorder %s131, %s132
      %p144 = scmp.eq.s32.totalorder %s33, 1
      %p145 = por %p143, %p144
      %p147 = scmp.ne.s32.totalorder %s132, %s146
      %p148 = scmp.eq.s32.totalorder %s33, 0
      %p149 = por %p147, %p148
      %s151 = sadd.s32 %s150, 1
      %p154 = scmp.eq.s32.totalorder %s27, 1
      %p155 = scmp.ne.s32.totalorder %s150, %s152
      %p156 = scmp.eq.s32.totalorder %s27, 0
      %p157 = por %p155, %p156
      %p158 = scmp.ne.s32.totalorder %s150, %s152
      %p159 = scmp.eq.s32.totalorder %s32, 1
      %p160 = por %p158, %p159
      %p161 = scmp.ne.s32.totalorder %s152, %s153
      %p162 = scmp.eq.s32.totalorder %s32, 0
      %p163 = por %p161, %p162
      %p164 = scmp.ne.s32.totalorder %s152, %s153
      %p165 = scmp.eq.s32.totalorder %s33, 1
      %p166 = por %p164, %p165
      %p168 = scmp.ne.s32.totalorder %s153, %s167
      %p169 = scmp.eq.s32.totalorder %s33, 0
      %p170 = por %p168, %p169
      %s172 = sadd.s32 %s171, 1
      %p175 = scmp.eq.s32.totalorder %s27, 1
      %p176 = scmp.ne.s32.totalorder %s171, %s173
      %p177 = scmp.eq.s32.totalorder %s27, 0
      %p178 = por %p176, %p177
      %p179 = scmp.ne.s32.totalorder %s171, %s173
      %p180 = scmp.eq.s32.totalorder %s32, 1
      %p181 = por %p179, %p180
      %p182 = scmp.ne.s32.totalorder %s173, %s174
      %p183 = scmp.eq.s32.totalorder %s32, 0
      %p184 = por %p182, %p183
      %p185 = scmp.ne.s32.totalorder %s173, %s174
      %p186 = scmp.eq.s32.totalorder %s33, 1
      %p187 = por %p185, %p186
      %p189 = scmp.ne.s32.totalorder %s174, %s188
      %p190 = scmp.eq.s32.totalorder %s33, 0
      %p191 = por %p189, %p190
      %s193 = sadd.s32 %s192, 1
      %p196 = scmp.eq.s32.totalorder %s27, 1
      %p197 = scmp.ne.s32.totalorder %s192, %s194
      %p198 = scmp.eq.s32.totalorder %s27, 0
      %p199 = por %p197, %p198
      %p200 = scmp.ne.s32.totalorder %s192, %s194
      %p201 = scmp.eq.s32.totalorder %s32, 1
      %p202 = por %p200, %p201
      %p203 = scmp.ne.s32.totalorder %s194, %s195
      %p204 = scmp.eq.s32.totalorder %s32, 0
      %p205 = por %p203, %p204
      %p206 = scmp.ne.s32.totalorder %s194, %s195
      %p207 = scmp.eq.s32.totalorder %s33, 1
      %p208 = por %p206, %p207
      %p210 = scmp.ne.s32.totalorder %s195, %s209
      %p211 = scmp.eq.s32.totalorder %s33, 0
      %p212 = por %p210, %p211
      %s214 = sadd.s32 %s213, 1
      %p217 = scmp.eq.s32.totalorder %s27, 1
      %p218 = scmp.ne.s32.totalorder %s213, %s215
      %p219 = scmp.eq.s32.totalorder %s27, 0
      %p220 = por %p218, %p219
      %p221 = scmp.ne.s32.totalorder %s213, %s215
      %p222 = scmp.eq.s32.totalorder %s32, 1
      %p223 = por %p221, %p222
      %p224 = scmp.ne.s32.totalorder %s215, %s216
      %p225 = scmp.eq.s32.totalorder %s32, 0
      %p226 = por %p224, %p225
      %p227 = scmp.ne.s32.totalorder %s215, %s216
      %p228 = scmp.eq.s32.totalorder %s33, 1
      %p229 = por %p227, %p228
      %p231 = scmp.ne.s32.totalorder %s216, %s230
      %p232 = scmp.eq.s32.totalorder %s33, 0
      %p233 = por %p231, %p232
      %s235 = sadd.s32 %s234, 1
      %p238 = scmp.eq.s32.totalorder %s27, 1
      %p239 = scmp.ne.s32.totalorder %s234, %s236
      %p240 = scmp.eq.s32.totalorder %s27, 0
      %p241 = por %p239, %p240
      %p242 = scmp.ne.s32.totalorder %s234, %s236
      %p243 = scmp.eq.s32.totalorder %s32, 1
      %p244 = por %p242, %p243
      %p245 = scmp.ne.s32.totalorder %s236, %s237
      %p246 = scmp.eq.s32.totalorder %s32, 0
      %p247 = por %p245, %p246
      %p248 = scmp.ne.s32.totalorder %s236, %s237
      %p249 = scmp.eq.s32.totalorder %s33, 1
      %p250 = por %p248, %p249
      %p252 = scmp.ne.s32.totalorder %s237, %s251
      %p253 = scmp.eq.s32.totalorder %s33, 0
      %p254 = por %p252, %p253
      %s256 = sadd.s32 %s255, 1
      %p259 = scmp.eq.s32.totalorder %s27, 1
      %p260 = scmp.ne.s32.totalorder %s255, %s257
      %p261 = scmp.eq.s32.totalorder %s27, 0
      %p262 = por %p260, %p261
      %p263 = scmp.ne.s32.totalorder %s255, %s257
      %p264 = scmp.eq.s32.totalorder %s32, 1
      %p265 = por %p263, %p264
      %p266 = scmp.ne.s32.totalorder %s257, %s258
      %p267 = scmp.eq.s32.totalorder %s32, 0
      %p268 = por %p266, %p267
      %p269 = scmp.ne.s32.totalorder %s257, %s258
      %p270 = scmp.eq.s32.totalorder %s33, 1
      %p271 = por %p269, %p270
      %p273 = scmp.ne.s32.totalorder %s258, %s272
      %p274 = scmp.eq.s32.totalorder %s33, 0
      %p275 = por %p273, %p274
      %s277 = sadd.s32 %s276, 1
      %p280 = scmp.eq.s32.totalorder %s27, 1
      %p281 = scmp.ne.s32.totalorder %s276, %s278
      %p282 = scmp.eq.s32.totalorder %s27, 0
      %p283 = por %p281, %p282
      %p284 = scmp.ne.s32.totalorder %s276, %s278
      %p285 = scmp.eq.s32.totalorder %s32, 1
      %p286 = por %p284, %p285
      %p287 = scmp.ne.s32.totalorder %s278, %s279
      %p288 = scmp.eq.s32.totalorder %s32, 0
      %p289 = por %p287, %p288
      %p290 = scmp.ne.s32.totalorder %s278, %s279
      %p291 = scmp.eq.s32.totalorder %s33, 1
      %p292 = por %p290, %p291
      %p294 = scmp.ne.s32.totalorder %s279, %s293
      %p295 = scmp.eq.s32.totalorder %s33, 0
      %p296 = por %p294, %p295
      %s298 = sadd.s32 %s297, 1
      %p301 = scmp.eq.s32.totalorder %s27, 1
      %p302 = scmp.ne.s32.totalorder %s297, %s299
      %p303 = scmp.eq.s32.totalorder %s27, 0
      %p304 = por %p302, %p303
      %p305 = scmp.ne.s32.totalorder %s297, %s299
      %p306 = scmp.eq.s32.totalorder %s32, 1
      %p307 = por %p305, %p306
      %p308 = scmp.ne.s32.totalorder %s299, %s300
      %p309 = scmp.eq.s32.totalorder %s32, 0
      %p310 = por %p308, %p309
      %p311 = scmp.ne.s32.totalorder %s299, %s300
      %p312 = scmp.eq.s32.totalorder %s33, 1
      %p313 = por %p311, %p312
      %p315 = scmp.ne.s32.totalorder %s300, %s314
      %p316 = scmp.eq.s32.totalorder %s33, 0
      %p317 = por %p315, %p316
      %s318 = ssub.s32 %s27, %s34
      %p319 = scmp.eq.s32.totalorder %s318, 0
      %s321 = sadd.s32 %s320, 1
      %s322 = scalar_select %p319, %s320, %s321
      %p325 = pneg %p319
      %p326 = scmp.eq.s32.totalorder %s27, 1
      %p327 = por %p325, %p326
      %p328 = scmp.ne.s32.totalorder %s320, %s323
      %p329 = scmp.eq.s32.totalorder %s27, 0
      %p330 = por %p328, %p329
      %p331 = scmp.ne.s32.totalorder %s320, %s323
      %p332 = scmp.eq.s32.totalorder %s32, 1
      %p333 = por %p331, %p332
      %p334 = scmp.ne.s32.totalorder %s323, %s324
      %p335 = scmp.eq.s32.totalorder %s32, 0
      %p336 = por %p334, %p335
      %p337 = scmp.ne.s32.totalorder %s323, %s324
      %p338 = scmp.eq.s32.totalorder %s33, 1
      %p339 = por %p337, %p338
      %p341 = scmp.ne.s32.totalorder %s324, %s340
      %p342 = scmp.eq.s32.totalorder %s33, 0
      %p343 = por %p341, %p342
      %s344 = ssub.s32 %s27, %s34
      %p345 = scmp.eq.s32.totalorder %s344, 0
      %s347 = sadd.s32 %s346, 1
      %s348 = scalar_select %p345, %s346, %s347
      %p351 = pneg %p345
      %p352 = scmp.eq.s32.totalorder %s27, 1
      %p353 = por %p351, %p352
      %p354 = scmp.ne.s32.totalorder %s346, %s349
      %p355 = scmp.eq.s32.totalorder %s27, 0
      %p356 = por %p354, %p355
      %p357 = scmp.ne.s32.totalorder %s346, %s349
      %p358 = scmp.eq.s32.totalorder %s32, 1
      %p359 = por %p357, %p358
      %p360 = scmp.ne.s32.totalorder %s349, %s350
      %p361 = scmp.eq.s32.totalorder %s32, 0
      %p362 = por %p360, %p361
      %p363 = scmp.ne.s32.totalorder %s349, %s350
      %p364 = scmp.eq.s32.totalorder %s33, 1
      %p365 = por %p363, %p364
      %p367 = scmp.ne.s32.totalorder %s350, %s366
      %p368 = scmp.eq.s32.totalorder %s33, 0
      %p369 = por %p367, %p368
      %p370 = scmp.le.s32.totalorder 1, %s27
      %p371 = scmp.lt.s32.totalorder %s27, 3
      %p372 = pnand %p370, %p371
      %p373 = pneg %p372
      // Predicated region
      $region9: #{tpu_custom_call.1} parent=5 // pred_check
        _
      $region10: #{tpu_custom_call.1} parent=5 // pred_check_branch
        %375 = sbr.rel (%p372) target = $region12
      $region11: #{tpu_custom_call.1} parent=5 // pred_region
        %s376 = ssub.s32 %s27, 1
        // Predicated region
        $region13: #{tpu_custom_call.1} parent=11 // pred_check
          %p377 = pneg %p100
        $region14: #{tpu_custom_call.1} parent=11 // pred_check_branch
          %379 = sbr.rel (%p377) target = $region16
        $region15: #{tpu_custom_call.1} parent=11 // pred_region
          _
        $region16: #{tpu_custom_call.1} parent=11 // pred_fallthru
          _
        // Predicated region
        $region17: #{tpu_custom_call.1} parent=11 // pred_check
          %p380 = pneg %p121
        $region18: #{tpu_custom_call.1} parent=11 // pred_check_branch
          %382 = sbr.rel (%p380) target = $region20
        $region19: #{tpu_custom_call.1} parent=11 // pred_region
          _
        $region20: #{tpu_custom_call.1} parent=11 // pred_fallthru
          _
        // Predicated region
        $region21: #{tpu_custom_call.1} parent=11 // pred_check
          %p383 = pneg %p142
        $region22: #{tpu_custom_call.1} parent=11 // pred_check_branch
          %385 = sbr.rel (%p383) target = $region24
        $region23: #{tpu_custom_call.1} parent=11 // pred_region
          _
        $region24: #{tpu_custom_call.1} parent=11 // pred_fallthru
          _
        // Predicated region
        $region25: #{tpu_custom_call.1} parent=11 // pred_check
          %p386 = pneg %p163
        $region26: #{tpu_custom_call.1} parent=11 // pred_check_branch
          %388 = sbr.rel (%p386) target = $region28
        $region27: #{tpu_custom_call.1} parent=11 // pred_region
          _
        $region28: #{tpu_custom_call.1} parent=11 // pred_fallthru
          _
        // Predicated region
        $region29: #{tpu_custom_call.1} parent=11 // pred_check
          %p389 = pneg %p184
        $region30: #{tpu_custom_call.1} parent=11 // pred_check_branch
          %391 = sbr.rel (%p389) target = $region32
        $region31: #{tpu_custom_call.1} parent=11 // pred_region
          _
        $region32: #{tpu_custom_call.1} parent=11 // pred_fallthru
          _
        // Predicated region
        $region33: #{tpu_custom_call.1} parent=11 // pred_check
          %p392 = pneg %p205
        $region34: #{tpu_custom_call.1} parent=11 // pred_check_branch
          %394 = sbr.rel (%p392) target = $region36
        $region35: #{tpu_custom_call.1} parent=11 // pred_region
          _
        $region36: #{tpu_custom_call.1} parent=11 // pred_fallthru
          _
        // Predicated region
        $region37: #{tpu_custom_call.1} parent=11 // pred_check
          %p395 = pneg %p226
        $region38: #{tpu_custom_call.1} parent=11 // pred_check_branch
          %397 = sbr.rel (%p395) target = $region40
        $region39: #{tpu_custom_call.1} parent=11 // pred_region
          _
        $region40: #{tpu_custom_call.1} parent=11 // pred_fallthru
          _
        // Predicated region
        $region41: #{tpu_custom_call.1} parent=11 // pred_check
          %p398 = pneg %p247
        $region42: #{tpu_custom_call.1} parent=11 // pred_check_branch
          %400 = sbr.rel (%p398) target = $region44
        $region43: #{tpu_custom_call.1} parent=11 // pred_region
          _
        $region44: #{tpu_custom_call.1} parent=11 // pred_fallthru
          _
        // Predicated region
        $region45: #{tpu_custom_call.1} parent=11 // pred_check
          %p401 = pneg %p268
        $region46: #{tpu_custom_call.1} parent=11 // pred_check_branch
          %403 = sbr.rel (%p401) target = $region48
        $region47: #{tpu_custom_call.1} parent=11 // pred_region
          _
        $region48: #{tpu_custom_call.1} parent=11 // pred_fallthru
          _
        // Predicated region
        $region49: #{tpu_custom_call.1} parent=11 // pred_check
          %p404 = pneg %p289
        $region50: #{tpu_custom_call.1} parent=11 // pred_check_branch
          %406 = sbr.rel (%p404) target = $region52
        $region51: #{tpu_custom_call.1} parent=11 // pred_region
          _
        $region52: #{tpu_custom_call.1} parent=11 // pred_fallthru
          _
        // Predicated region
        $region53: #{tpu_custom_call.1} parent=11 // pred_check
          %p407 = pneg %p310
        $region54: #{tpu_custom_call.1} parent=11 // pred_check_branch
          %409 = sbr.rel (%p407) target = $region56
        $region55: #{tpu_custom_call.1} parent=11 // pred_region
          _
        $region56: #{tpu_custom_call.1} parent=11 // pred_fallthru
          _
      $region12: #{tpu_custom_call.1} parent=5 // pred_fallthru
        _
      %p410 = scmp.lt.s32.totalorder %s27, 2
      // Predicated region
      $region57: #{tpu_custom_call.1} parent=5 // pred_check
        %p411 = pneg %p410
      $region58: #{tpu_custom_call.1} parent=5 // pred_check_branch
        %413 = sbr.rel (%p411) target = $region60
      $region59: #{tpu_custom_call.1} parent=5 // pred_region
        // Predicated region
        $region61: #{tpu_custom_call.1} parent=59 // pred_check
          %p414 = pneg %p47
        $region62: #{tpu_custom_call.1} parent=59 // pred_check_branch
          %416 = sbr.rel (%p414) target = $region64
        $region63: #{tpu_custom_call.1} parent=59 // pred_region
          %p417 = scmp.lt.s32.totalorder %s27, 1
          %s418 = scalar_select %p417, %s27, 1
          %s419 = smul.addr %s418, 8
          %s420 = scalar_lea.vmem %s0, %s419
        $region64: #{tpu_custom_call.1} parent=59 // pred_fallthru
          _
        // Predicated region
        $region65: #{tpu_custom_call.1} parent=59 // pred_check
          %p421 = pneg %p73
        $region66: #{tpu_custom_call.1} parent=59 // pred_check_branch
          %423 = sbr.rel (%p421) target = $region68
        $region67: #{tpu_custom_call.1} parent=59 // pred_region
          %p424 = scmp.lt.s32.totalorder %s27, 1
          %s425 = scalar_select %p424, %s27, 1
          %s426 = smul.addr %s425, 8
          %s427 = scalar_lea.vmem %s1, %s426
        $region68: #{tpu_custom_call.1} parent=59 // pred_fallthru
          _
      $region60: #{tpu_custom_call.1} parent=5 // pred_fallthru
        _
      %p428 = scmp.le.s32.totalorder 1, %s27
      %p429 = scmp.lt.s32.totalorder %s27, 3
      %p430 = pnand %p428, %p429
      %p431 = pneg %p430
      // Predicated region
      $region69: #{tpu_custom_call.1} parent=5 // pred_check
        _
      $region70: #{tpu_custom_call.1} parent=5 // pred_check_branch
        %433 = sbr.rel (%p430) target = $region72
      $region71: #{tpu_custom_call.1} parent=5 // pred_region
        %s434 = ssub.s32 %s27, 1
        %p435 = scmp.lt.s32.totalorder %s32, 1
        %s436 = scalar_select %p435, %s32, 1
        %s437 = smul.addr %s436, 8
        %s438 = scalar_lea.vmem %s0, %s437
        %p439 = pneg %p53
        %p440 = pneg %p50
        %p441 = scmp.lt.s32.totalorder %s32, 1
        %s442 = scalar_select %p441, %s32, 1
        %s443 = smul.addr %s442, 8
        %s444 = scalar_lea.vmem %s1, %s443
        %p445 = pneg %p79
        %p446 = pneg %p76
        %p447 = pneg %p100
        %p448 = pneg %p97
        %p449 = pneg %p121
        %p450 = pneg %p118
        %p451 = pneg %p142
        %p452 = pneg %p139
        %p453 = pneg %p163
        %p454 = pneg %p160
        %p455 = pneg %p184
        %p456 = pneg %p181
        %p457 = pneg %p205
        %p458 = pneg %p202
        %p459 = pneg %p226
        %p460 = pneg %p223
        %p461 = pneg %p247
        %p462 = pneg %p244
        %p463 = pneg %p268
        %p464 = pneg %p265
        %p465 = pneg %p289
        %p466 = pneg %p286
        %p467 = pneg %p310
        %p468 = pneg %p307
        %p469 = pneg %p336
        %p470 = pneg %p333
        %s471 = sand.u32 %s323, 1
        %s472 = scalar_lea.sflag [#allocation3], %s471
        %s473 = sand.u32 %s323, 1
        %s474 = smul.addr %s473, 8
        %s475 = scalar_lea.vmem [#allocation2], %s474
        %p476 = pneg %p362
        %p477 = pneg %p359
        %s478 = sand.u32 %s349, 1
        %s479 = scalar_lea.sflag [#allocation5], %s478
        %s480 = sand.u32 %s349, 1
        %s481 = smul.addr %s480, 8
        %s482 = scalar_lea.vmem [#allocation4], %s481
        %p483 = scmp.lt.s32.totalorder %s32, 1
        %s484 = scalar_select %p483, %s32, 1
        %s485 = smul.addr %s484, 8
        %s486 = scalar_lea.vmem %s0, %s485
        %p487 = scmp.lt.s32.totalorder %s32, 1
        %s488 = scalar_select %p487, %s32, 1
        %s489 = smul.addr %s488, 8
        %s490 = scalar_lea.vmem %s1, %s489
        %v492 = vld [vmem:[%s486] sm:$0xff]
        %v493 = vld [vmem:[%s490] sm:$0xff]
        %v494 = vpack.c.bf16 %v492, %v492
        %v495 = vpack.c.bf16 %v493, %v493
        %v496 = vld [vmem:[%s2] sm:$0xf]
        %v497 = vld [vmem:[%s2 + $0x4] sm:$0xf]
        %v498 = vld [vmem:[%s2 + $0x8] sm:$0xf]
        %v499 = vld [vmem:[%s2 + $0xc] sm:$0xf]
        %v500 = vld [vmem:[%s3] sm:$0xf]
        %v501 = vld [vmem:[%s3 + $0x4] sm:$0xf]
        %v504 = vunpack.c.l.b16 %v500
        %v505 = vunpack.c.l.b16 %v501
        %v506 = vpack.c.b16 %v505, %v504
        %vm508 = vcmask 130048
        %v510 = vsel %vm508, %v495, 0
        %512 = vmatprep.subr.bf16.mxu0 0
        %513 = vmatpush1.bf16.msra.mxu0 0
        %514 = vmatprep.subr.bf16.mxu0 0
        %515 = vmatpush1.bf16.msra.mxu0 0
        %516 = vmatprep.subr.bf16.mxu0 0
        %517 = vmatpush1.bf16.msra.mxu0 0
        %518 = vmatprep.subr.bf16.mxu0 0
        %519 = vmatpush1.bf16.msra.mxu0 0
        %520 = vmatprep.subr.bf16.mxu0 0
        %521 = vmatpush1.bf16.msra.mxu0 0
        %522 = vmatprep.subr.bf16.mxu0 0
        %523 = vmatpush1.bf16.msra.mxu0 0
        %524 = vmatprep.subr.bf16.mxu0 0
        %525 = vmatpush1.bf16.msra.mxu0 0
        %526 = vmatprep.subr.bf16.mxu0 0
        %527 = vmatpush1.bf16.msra.mxu0 %v506
        %528 = vmatprep.subr.bf16.mxu0 0
        %529 = vmatpush2.bf16.msra.mxu0 0
        %530 = vmatprep.subr.bf16.mxu0 0
        %531 = vmatpush2.bf16.msra.mxu0 0
        %532 = vmatprep.subr.bf16.mxu0 0
        %533 = vmatpush2.bf16.msra.mxu0 0
        %534 = vmatprep.subr.bf16.mxu0 0
        %535 = vmatpush2.bf16.msra.mxu0 0
        %536 = vmatprep.subr.bf16.mxu0 0
        %537 = vmatpush2.bf16.msra.mxu0 0
        %538 = vmatprep.subr.bf16.mxu0 0
        %539 = vmatpush2.bf16.msra.mxu0 0
        %540 = vmatprep.subr.bf16.mxu0 0
        %541 = vmatpush2.bf16.msra.mxu0 0
        %542 = vmatprep.subr.bf16.mxu0 0
        %543 = vmatpush2.bf16.msra.mxu0 0
        %544 = vmatprep.mubr.bf16.mxu0 0
        %545 = vmatmul.mubr.bf16.gmra.mxu0 %v510
        %v546 = vpop.f32.mrf.mxu0
        %v547 = vadd.f32 0.0, %v546
        %v548 = vpop.f32.mrf.mxu0
        %v549 = vpop.f32.mrf.mxu0
        %v550 = vpop.f32.mrf.mxu0
        %551 = vdwg.mxu0
        %v556 = vunpack.c.l.b16 %v496
        %v557 = vunpack.c.l.b16 %v497
        %v558 = vunpack.c.l.b16 %v498
        %v559 = vunpack.c.l.b16 %v499
        %v560 = vpack.c.b16 %v557, %v556
        %v561 = vpack.c.b16 %v559, %v558
        %vm564 = vcmask 261120
        %v566 = vsel %vm564, %v494, 0
        %568 = vmatprep.subr.bf16.mxu0 0
        %569 = vmatpush1.bf16.msra.mxu0 0
        %570 = vmatprep.subr.bf16.mxu0 0
        %571 = vmatpush1.bf16.msra.mxu0 0
        %572 = vmatprep.subr.bf16.mxu0 0
        %573 = vmatpush1.bf16.msra.mxu0 0
        %574 = vmatprep.subr.bf16.mxu0 0
        %575 = vmatpush1.bf16.msra.mxu0 0
        %576 = vmatprep.subr.bf16.mxu0 0
        %577 = vmatpush1.bf16.msra.mxu0 0
        %578 = vmatprep.subr.bf16.mxu0 0
        %579 = vmatpush1.bf16.msra.mxu0 0
        %580 = vmatprep.subr.bf16.mxu0 0
        %581 = vmatpush1.bf16.msra.mxu0 %v561
        %582 = vmatprep.subr.bf16.mxu0 0
        %583 = vmatpush1.bf16.msra.mxu0 %v560
        %584 = vmatprep.subr.bf16.mxu0 0
        %585 = vmatpush2.bf16.msra.mxu0 0
        %586 = vmatprep.subr.bf16.mxu0 0
        %587 = vmatpush2.bf16.msra.mxu0 0
        %588 = vmatprep.subr.bf16.mxu0 0
        %589 = vmatpush2.bf16.msra.mxu0 0
        %590 = vmatprep.subr.bf16.mxu0 0
        %591 = vmatpush2.bf16.msra.mxu0 0
        %592 = vmatprep.subr.bf16.mxu0 0
        %593 = vmatpush2.bf16.msra.mxu0 0
        %594 = vmatprep.subr.bf16.mxu0 0
        %595 = vmatpush2.bf16.msra.mxu0 0
        %596 = vmatprep.subr.bf16.mxu0 0
        %597 = vmatpush2.bf16.msra.mxu0 0
        %598 = vmatprep.subr.bf16.mxu0 0
        %599 = vmatpush2.bf16.msra.mxu0 0
        %600 = vmatprep.mubr.bf16.mxu0 0
        %601 = vmatmul.mubr.bf16.gmra.mxu0 %v566
        %v602 = vpop.f32.mrf.mxu0
        %v603 = vadd.f32 %v547, %v602
        %v604 = vpop.f32.mrf.mxu0
        %v605 = vpop.f32.mrf.mxu0
        %v606 = vpop.f32.mrf.mxu0
        %607 = vdwg.mxu0
        %v608 = vld [vmem:[%s9] sm:$0x1]
        %v610 = vlaneseq
        %v611 = vshrl.u32 %v610, 7
        %v612 = vsub.s32 0, %v611
        %v613 = vrot.slane %v608, %v612
        %v615 = vadd.f32 %v603, %v613
        %v616 = vmul.f32 %v615, 0.5
        %v617 = vmul.f32 %v615, 0.044715
        %v618 = vmul.f32 %v617, %v615
        %v619 = vmul.f32 %v618, %v615
        %v620 = vadd.f32 %v615, %v619
        %v621 = vmul.f32 %v620, 0.7978846
        %v622 = vtanh.pop %v621
        %v623 = vadd.f32 %v622, 1.0
        %v624 = vmul.f32 %v616, %v623
        %s625 = scalar_lea.vmem %s2, 16
        %v626 = vld [vmem:[%s625] sm:$0xf]
        %v627 = vld [vmem:[%s625 + $0x4] sm:$0xf]
        %v628 = vld [vmem:[%s625 + $0x8] sm:$0xf]
        %v629 = vld [vmem:[%s625 + $0xc] sm:$0xf]
        %s630 = scalar_lea.vmem %s3, 8
        %v631 = vld [vmem:[%s630] sm:$0xf]
        %v632 = vld [vmem:[%s630 + $0x4] sm:$0xf]
        %v635 = vunpack.c.l.b16 %v631
        %v636 = vunpack.c.l.b16 %v632
        %v637 = vpack.c.b16 %v636, %v635
        %639 = vmatprep.subr.bf16.mxu0 0
        %640 = vmatpush1.bf16.msra.mxu0 0
        %641 = vmatprep.subr.bf16.mxu0 0
        %642 = vmatpush1.bf16.msra.mxu0 0
        %643 = vmatprep.subr.bf16.mxu0 0
        %644 = vmatpush1.bf16.msra.mxu0 0
        %645 = vmatprep.subr.bf16.mxu0 0
        %646 = vmatpush1.bf16.msra.mxu0 0
        %647 = vmatprep.subr.bf16.mxu0 0
        %648 = vmatpush1.bf16.msra.mxu0 0
        %649 = vmatprep.subr.bf16.mxu0 0
        %650 = vmatpush1.bf16.msra.mxu0 0
        %651 = vmatprep.subr.bf16.mxu0 0
        %652 = vmatpush1.bf16.msra.mxu0 0
        %653 = vmatprep.subr.bf16.mxu0 0
        %654 = vmatpush1.bf16.msra.mxu0 %v637
        %655 = vmatprep.subr.bf16.mxu0 0
        %656 = vmatpush2.bf16.msra.mxu0 0
        %657 = vmatprep.subr.bf16.mxu0 0
        %658 = vmatpush2.bf16.msra.mxu0 0
        %659 = vmatprep.subr.bf16.mxu0 0
        %660 = vmatpush2.bf16.msra.mxu0 0
        %661 = vmatprep.subr.bf16.mxu0 0
        %662 = vmatpush2.bf16.msra.mxu0 0
        %663 = vmatprep.subr.bf16.mxu0 0
        %664 = vmatpush2.bf16.msra.mxu0 0
        %665 = vmatprep.subr.bf16.mxu0 0
        %666 = vmatpush2.bf16.msra.mxu0 0
        %667 = vmatprep.subr.bf16.mxu0 0
        %668 = vmatpush2.bf16.msra.mxu0 0
        %669 = vmatprep.subr.bf16.mxu0 0
        %670 = vmatpush2.bf16.msra.mxu0 0
        %671 = vmatprep.mubr.bf16.mxu0 0
        %672 = vmatmul.mubr.bf16.gmra.mxu0 %v510
        %v673 = vpop.f32.mrf.mxu0
        %v674 = vadd.f32 0.0, %v673
        %v675 = vpop.f32.mrf.mxu0
        %v676 = vpop.f32.mrf.mxu0
        %v677 = vpop.f32.mrf.mxu0
        %678 = vdwg.mxu0
        %v683 = vunpack.c.l.b16 %v626
        %v684 = vunpack.c.l.b16 %v627
        %v685 = vunpack.c.l.b16 %v628
        %v686 = vunpack.c.l.b16 %v629
        %v687 = vpack.c.b16 %v684, %v683
        %v688 = vpack.c.b16 %v686, %v685
        %691 = vmatprep.subr.bf16.mxu0 0
        %692 = vmatpush1.bf16.msra.mxu0 0
        %693 = vmatprep.subr.bf16.mxu0 0
        %694 = vmatpush1.bf16.msra.mxu0 0
        %695 = vmatprep.subr.bf16.mxu0 0
        %696 = vmatpush1.bf16.msra.mxu0 0
        %697 = vmatprep.subr.bf16.mxu0 0
        %698 = vmatpush1.bf16.msra.mxu0 0
        %699 = vmatprep.subr.bf16.mxu0 0
        %700 = vmatpush1.bf16.msra.mxu0 0
        %701 = vmatprep.subr.bf16.mxu0 0
        %702 = vmatpush1.bf16.msra.mxu0 0
        %703 = vmatprep.subr.bf16.mxu0 0
        %704 = vmatpush1.bf16.msra.mxu0 %v688
        %705 = vmatprep.subr.bf16.mxu0 0
        %706 = vmatpush1.bf16.msra.mxu0 %v687
        %707 = vmatprep.subr.bf16.mxu0 0
        %708 = vmatpush2.bf16.msra.mxu0 0
        %709 = vmatprep.subr.bf16.mxu0 0
        %710 = vmatpush2.bf16.msra.mxu0 0
        %711 = vmatprep.subr.bf16.mxu0 0
        %712 = vmatpush2.bf16.msra.mxu0 0
        %713 = vmatprep.subr.bf16.mxu0 0
        %714 = vmatpush2.bf16.msra.mxu0 0
        %715 = vmatprep.subr.bf16.mxu0 0
        %716 = vmatpush2.bf16.msra.mxu0 0
        %717 = vmatprep.subr.bf16.mxu0 0
        %718 = vmatpush2.bf16.msra.mxu0 0
        %719 = vmatprep.subr.bf16.mxu0 0
        %720 = vmatpush2.bf16.msra.mxu0 0
        %721 = vmatprep.subr.bf16.mxu0 0
        %722 = vmatpush2.bf16.msra.mxu0 0
        %723 = vmatprep.mubr.bf16.mxu0 0
        %724 = vmatmul.mubr.bf16.gmra.mxu0 %v566
        %v725 = vpop.f32.mrf.mxu0
        %v726 = vadd.f32 %v674, %v725
        %v727 = vpop.f32.mrf.mxu0
        %v728 = vpop.f32.mrf.mxu0
        %v729 = vpop.f32.mrf.mxu0
        %730 = vdwg.mxu0
        %s731 = scalar_lea.vmem %s9, 1
        %v732 = vld [vmem:[%s731] sm:$0x1]
        %v734 = vlaneseq
        %v735 = vshrl.u32 %v734, 7
        %v736 = vsub.s32 0, %v735
        %v737 = vrot.slane %v732, %v736
        %v739 = vadd.f32 %v726, %v737
        %v740 = vxor.u32 %v739, 2147483648
        %v741 = vmul.f32 %v740, 1.442695
        %v742 = vpow.pop %v741
        %v743 = vadd.f32 %v742, 1.0
        %v744 = vrcp.pop %v743
        %v745 = vmul.f32 1.0, %v744
        %s746 = scalar_lea.vmem %s2, 32
        %v747 = vld [vmem:[%s746] sm:$0xf]
        %v748 = vld [vmem:[%s746 + $0x4] sm:$0xf]
        %v749 = vld [vmem:[%s746 + $0x8] sm:$0xf]
        %v750 = vld [vmem:[%s746 + $0xc] sm:$0xf]
        %s751 = scalar_lea.vmem %s3, 16
        %v752 = vld [vmem:[%s751] sm:$0xf]
        %v753 = vld [vmem:[%s751 + $0x4] sm:$0xf]
        %v756 = vunpack.c.l.b16 %v752
        %v757 = vunpack.c.l.b16 %v753
        %v758 = vpack.c.b16 %v757, %v756
        %760 = vmatprep.subr.bf16.mxu0 0
        %761 = vmatpush1.bf16.msra.mxu0 0
        %762 = vmatprep.subr.bf16.mxu0 0
        %763 = vmatpush1.bf16.msra.mxu0 0
        %764 = vmatprep.subr.bf16.mxu0 0
        %765 = vmatpush1.bf16.msra.mxu0 0
        %766 = vmatprep.subr.bf16.mxu0 0
        %767 = vmatpush1.bf16.msra.mxu0 0
        %768 = vmatprep.subr.bf16.mxu0 0
        %769 = vmatpush1.bf16.msra.mxu0 0
        %770 = vmatprep.subr.bf16.mxu0 0
        %771 = vmatpush1.bf16.msra.mxu0 0
        %772 = vmatprep.subr.bf16.mxu0 0
        %773 = vmatpush1.bf16.msra.mxu0 0
        %774 = vmatprep.subr.bf16.mxu0 0
        %775 = vmatpush1.bf16.msra.mxu0 %v758
        %776 = vmatprep.subr.bf16.mxu0 0
        %777 = vmatpush2.bf16.msra.mxu0 0
        %778 = vmatprep.subr.bf16.mxu0 0
        %779 = vmatpush2.bf16.msra.mxu0 0
        %780 = vmatprep.subr.bf16.mxu0 0
        %781 = vmatpush2.bf16.msra.mxu0 0
        %782 = vmatprep.subr.bf16.mxu0 0
        %783 = vmatpush2.bf16.msra.mxu0 0
        %784 = vmatprep.subr.bf16.mxu0 0
        %785 = vmatpush2.bf16.msra.mxu0 0
        %786 = vmatprep.subr.bf16.mxu0 0
        %787 = vmatpush2.bf16.msra.mxu0 0
        %788 = vmatprep.subr.bf16.mxu0 0
        %789 = vmatpush2.bf16.msra.mxu0 0
        %790 = vmatprep.subr.bf16.mxu0 0
        %791 = vmatpush2.bf16.msra.mxu0 0
        %792 = vmatprep.mubr.bf16.mxu0 0
        %793 = vmatmul.mubr.bf16.gmra.mxu0 %v510
        %v794 = vpop.f32.mrf.mxu0
        %v795 = vadd.f32 0.0, %v794
        %v796 = vpop.f32.mrf.mxu0
        %v797 = vpop.f32.mrf.mxu0
        %v798 = vpop.f32.mrf.mxu0
        %799 = vdwg.mxu0
        %v804 = vunpack.c.l.b16 %v747
        %v805 = vunpack.c.l.b16 %v748
        %v806 = vunpack.c.l.b16 %v749
        %v807 = vunpack.c.l.b16 %v750
        %v808 = vpack.c.b16 %v805, %v804
        %v809 = vpack.c.b16 %v807, %v806
        %812 = vmatprep.subr.bf16.mxu0 0
        %813 = vmatpush1.bf16.msra.mxu0 0
        %814 = vmatprep.subr.bf16.mxu0 0
        %815 = vmatpush1.bf16.msra.mxu0 0
        %816 = vmatprep.subr.bf16.mxu0 0
        %817 = vmatpush1.bf16.msra.mxu0 0
        %818 = vmatprep.subr.bf16.mxu0 0
        %819 = vmatpush1.bf16.msra.mxu0 0
        %820 = vmatprep.subr.bf16.mxu0 0
        %821 = vmatpush1.bf16.msra.mxu0 0
        %822 = vmatprep.subr.bf16.mxu0 0
        %823 = vmatpush1.bf16.msra.mxu0 0
        %824 = vmatprep.subr.bf16.mxu0 0
        %825 = vmatpush1.bf16.msra.mxu0 %v809
        %826 = vmatprep.subr.bf16.mxu0 0
        %827 = vmatpush1.bf16.msra.mxu0 %v808
        %828 = vmatprep.subr.bf16.mxu0 0
        %829 = vmatpush2.bf16.msra.mxu0 0
        %830 = vmatprep.subr.bf16.mxu0 0
        %831 = vmatpush2.bf16.msra.mxu0 0
        %832 = vmatprep.subr.bf16.mxu0 0
        %833 = vmatpush2.bf16.msra.mxu0 0
        %834 = vmatprep.subr.bf16.mxu0 0
        %835 = vmatpush2.bf16.msra.mxu0 0
        %836 = vmatprep.subr.bf16.mxu0 0
        %837 = vmatpush2.bf16.msra.mxu0 0
        %838 = vmatprep.subr.bf16.mxu0 0
        %839 = vmatpush2.bf16.msra.mxu0 0
        %840 = vmatprep.subr.bf16.mxu0 0
        %841 = vmatpush2.bf16.msra.mxu0 0
        %842 = vmatprep.subr.bf16.mxu0 0
        %843 = vmatpush2.bf16.msra.mxu0 0
        %844 = vmatprep.mubr.bf16.mxu0 0
        %845 = vmatmul.mubr.bf16.gmra.mxu0 %v566
        %v846 = vpop.f32.mrf.mxu0
        %v847 = vadd.f32 %v795, %v846
        %v848 = vpop.f32.mrf.mxu0
        %v849 = vpop.f32.mrf.mxu0
        %v850 = vpop.f32.mrf.mxu0
        %851 = vdwg.mxu0
        %s852 = scalar_lea.vmem %s9, 2
        %v853 = vld [vmem:[%s852] sm:$0x1]
        %v855 = vlaneseq
        %v856 = vshrl.u32 %v855, 7
        %v857 = vsub.s32 0, %v856
        %v858 = vrot.slane %v853, %v857
        %v860 = vadd.f32 %v847, %v858
        %v861 = vmul.f32 %v745, %v860
        %v862 = vadd.f32 %v624, %v861
        %v863 = vpack.c.bf16 %v862, %v862
        %v864 = vld [vmem:[%s4] sm:$0xf]
        %v865 = vld [vmem:[%s4 + $0x4] sm:$0xf]
        %v866 = vld [vmem:[%s4 + $0x8] sm:$0xf]
        %v867 = vld [vmem:[%s4 + $0xc] sm:$0xf]
        %v868 = vld [vmem:[%s4 + $0x10] sm:$0xf]
        %v869 = vld [vmem:[%s4 + $0x14] sm:$0xf]
        %v870 = vld [vmem:[%s10] sm:$0x1]
        %v872 = vlaneseq
        %v873 = vshrl.u32 %v872, 7
        %v874 = vsub.s32 0, %v873
        %v875 = vrot.slane %v870, %v874
        %v883 = vunpack.c.l.b16 %v864
        %v884 = vunpack.c.l.b16 %v865
        %v885 = vunpack.c.l.b16 %v866
        %v886 = vunpack.c.l.b16 %v867
        %v887 = vunpack.c.l.b16 %v868
        %v888 = vunpack.c.l.b16 %v869
        %v889 = vpack.c.b16 %v884, %v883
        %v890 = vpack.c.b16 %v886, %v885
        %v891 = vpack.c.b16 %v888, %v887
        %vm895 = vcmask 392192
        %v897 = vsel %vm895, %v863, 0
        %899 = vmatprep.subr.bf16.mxu0 0
        %900 = vmatpush1.bf16.msra.mxu0 0
        %901 = vmatprep.subr.bf16.mxu0 0
        %902 = vmatpush1.bf16.msra.mxu0 0
        %903 = vmatprep.subr.bf16.mxu0 0
        %904 = vmatpush1.bf16.msra.mxu0 0
        %905 = vmatprep.subr.bf16.mxu0 0
        %906 = vmatpush1.bf16.msra.mxu0 0
        %907 = vmatprep.subr.bf16.mxu0 0
        %908 = vmatpush1.bf16.msra.mxu0 0
        %909 = vmatprep.subr.bf16.mxu0 0
        %910 = vmatpush1.bf16.msra.mxu0 %v891
        %911 = vmatprep.subr.bf16.mxu0 0
        %912 = vmatpush1.bf16.msra.mxu0 %v890
        %913 = vmatprep.subr.bf16.mxu0 0
        %914 = vmatpush1.bf16.msra.mxu0 %v889
        %915 = vmatprep.subr.bf16.mxu0 0
        %916 = vmatpush2.bf16.msra.mxu0 0
        %917 = vmatprep.subr.bf16.mxu0 0
        %918 = vmatpush2.bf16.msra.mxu0 0
        %919 = vmatprep.subr.bf16.mxu0 0
        %920 = vmatpush2.bf16.msra.mxu0 0
        %921 = vmatprep.subr.bf16.mxu0 0
        %922 = vmatpush2.bf16.msra.mxu0 0
        %923 = vmatprep.subr.bf16.mxu0 0
        %924 = vmatpush2.bf16.msra.mxu0 0
        %925 = vmatprep.subr.bf16.mxu0 0
        %926 = vmatpush2.bf16.msra.mxu0 0
        %927 = vmatprep.subr.bf16.mxu0 0
        %928 = vmatpush2.bf16.msra.mxu0 0
        %929 = vmatprep.subr.bf16.mxu0 0
        %930 = vmatpush2.bf16.msra.mxu0 0
        %931 = vmatprep.mubr.bf16.mxu0 0
        %932 = vmatmul.mubr.bf16.gmra.mxu0 %v897
        %v933 = vpop.f32.mrf.mxu0
        %v934 = vadd.f32 %v875, %v933
        %v935 = vpop.f32.mrf.mxu0
        %v936 = vpop.f32.mrf.mxu0
        %v937 = vpop.f32.mrf.mxu0
        %938 = vdwg.mxu0
        %v939 = vmax.f32 %v934, 0.0
        %v940 = vpack.c.bf16 %v939, %v939
        %v941 = vld [vmem:[%s7] sm:$0xf]
        %v942 = vld [vmem:[%s7 + $0x4] sm:$0xf]
        %v943 = vld [vmem:[%s7 + $0x8] sm:$0xf]
        %v944 = vld [vmem:[%s7 + $0xc] sm:$0xf]
        %v945 = vld [vmem:[%s7 + $0x10] sm:$0xf]
        %v946 = vld [vmem:[%s7 + $0x14] sm:$0xf]
        %v947 = vld [vmem:[%s7 + $0x18] sm:$0xf]
        %v948 = vld [vmem:[%s7 + $0x1c] sm:$0xf]
        %v949 = vld [vmem:[%s7 + $0x20] sm:$0xf]
        %v950 = vld [vmem:[%s7 + $0x24] sm:$0xf]
        %v951 = vld [vmem:[%s7 + $0x28] sm:$0xf]
        %v952 = vld [vmem:[%s7 + $0x2c] sm:$0xf]
        %v953 = vld [vmem:[%s7 + $0x30] sm:$0xf]
        %v954 = vld [vmem:[%s7 + $0x34] sm:$0xf]
        %v955 = vld [vmem:[%s7 + $0x38] sm:$0xf]
        %v956 = vld [vmem:[%s7 + $0x3c] sm:$0xf]
        %v957 = vld [vmem:[%s11] sm:$0x1]
        %v959 = vlaneseq
        %v960 = vshrl.u32 %v959, 7
        %v961 = vsub.s32 0, %v960
        %v962 = vrot.slane %v957, %v961
        %v980 = vunpack.c.l.b16 %v941
        %v981 = vunpack.c.l.b16 %v942
        %v982 = vunpack.c.l.b16 %v943
        %v983 = vunpack.c.l.b16 %v944
        %v984 = vunpack.c.l.b16 %v945
        %v985 = vunpack.c.l.b16 %v946
        %v986 = vunpack.c.l.b16 %v947
        %v987 = vunpack.c.l.b16 %v948
        %v988 = vunpack.c.l.b16 %v949
        %v989 = vunpack.c.l.b16 %v950
        %v990 = vunpack.c.l.b16 %v951
        %v991 = vunpack.c.l.b16 %v952
        %v992 = vunpack.c.l.b16 %v953
        %v993 = vunpack.c.l.b16 %v954
        %v994 = vunpack.c.l.b16 %v955
        %v995 = vunpack.c.l.b16 %v956
        %v996 = vpack.c.b16 %v981, %v980
        %v997 = vpack.c.b16 %v983, %v982
        %v998 = vpack.c.b16 %v985, %v984
        %v999 = vpack.c.b16 %v987, %v986
        %v1000 = vpack.c.b16 %v989, %v988
        %v1001 = vpack.c.b16 %v991, %v990
        %v1002 = vpack.c.b16 %v993, %v992
        %v1003 = vpack.c.b16 %v995, %v994
        %1012 = vmatprep.subr.bf16.mxu0 0
        %1013 = vmatpush1.bf16.msra.mxu0 %v1003
        %1014 = vmatprep.subr.bf16.mxu0 0
        %1015 = vmatpush1.bf16.msra.mxu0 %v1002
        %1016 = vmatprep.subr.bf16.mxu0 0
        %1017 = vmatpush1.bf16.msra.mxu0 %v1001
        %1018 = vmatprep.subr.bf16.mxu0 0
        %1019 = vmatpush1.bf16.msra.mxu0 %v1000
        %1020 = vmatprep.subr.bf16.mxu0 0
        %1021 = vmatpush1.bf16.msra.mxu0 %v999
        %1022 = vmatprep.subr.bf16.mxu0 0
        %1023 = vmatpush1.bf16.msra.mxu0 %v998
        %1024 = vmatprep.subr.bf16.mxu0 0
        %1025 = vmatpush1.bf16.msra.mxu0 %v997
        %1026 = vmatprep.subr.bf16.mxu0 0
        %1027 = vmatpush1.bf16.msra.mxu0 %v996
        %1028 = vmatprep.subr.bf16.mxu0 0
        %1029 = vmatpush2.bf16.msra.mxu0 0
        %1030 = vmatprep.subr.bf16.mxu0 0
        %1031 = vmatpush2.bf16.msra.mxu0 0
        %1032 = vmatprep.subr.bf16.mxu0 0
        %1033 = vmatpush2.bf16.msra.mxu0 0
        %1034 = vmatprep.subr.bf16.mxu0 0
        %1035 = vmatpush2.bf16.msra.mxu0 0
        %1036 = vmatprep.subr.bf16.mxu0 0
        %1037 = vmatpush2.bf16.msra.mxu0 0
        %1038 = vmatprep.subr.bf16.mxu0 0
        %1039 = vmatpush2.bf16.msra.mxu0 0
        %1040 = vmatprep.subr.bf16.mxu0 0
        %1041 = vmatpush2.bf16.msra.mxu0 0
        %1042 = vmatprep.subr.bf16.mxu0 0
        %1043 = vmatpush2.bf16.msra.mxu0 0
        %1044 = vmatprep.mubr.bf16.mxu0 0
        %1045 = vmatmul.mubr.bf16.gmra.mxu0 %v940
        %v1046 = vpop.f32.mrf.mxu0
        %v1047 = vadd.f32 %v962, %v1046
        %v1048 = vpop.f32.mrf.mxu0
        %v1049 = vpop.f32.mrf.mxu0
        %v1050 = vpop.f32.mrf.mxu0
        %1051 = vdwg.mxu0
        %v1052 = vld [vmem:[%s8] sm:$0xf]
        %v1053 = vld [vmem:[%s8 + $0x4] sm:$0xf]
        %v1054 = vld [vmem:[%s8 + $0x8] sm:$0xf]
        %v1055 = vld [vmem:[%s8 + $0xc] sm:$0xf]
        %v1056 = vld [vmem:[%s8 + $0x10] sm:$0xf]
        %v1057 = vld [vmem:[%s8 + $0x14] sm:$0xf]
        %v1058 = vld [vmem:[%s8 + $0x18] sm:$0xf]
        %v1059 = vld [vmem:[%s8 + $0x1c] sm:$0xf]
        %v1060 = vld [vmem:[%s8 + $0x20] sm:$0xf]
        %v1061 = vld [vmem:[%s8 + $0x24] sm:$0xf]
        %v1062 = vld [vmem:[%s8 + $0x28] sm:$0xf]
        %v1063 = vld [vmem:[%s8 + $0x2c] sm:$0xf]
        %v1064 = vld [vmem:[%s8 + $0x30] sm:$0xf]
        %v1065 = vld [vmem:[%s8 + $0x34] sm:$0xf]
        %v1066 = vld [vmem:[%s8 + $0x38] sm:$0xf]
        %v1067 = vld [vmem:[%s8 + $0x3c] sm:$0xf]
        %v1068 = vld [vmem:[%s12] sm:$0x1]
        %v1070 = vlaneseq
        %v1071 = vshrl.u32 %v1070, 7
        %v1072 = vsub.s32 0, %v1071
        %v1073 = vrot.slane %v1068, %v1072
        %v1091 = vunpack.c.l.b16 %v1052
        %v1092 = vunpack.c.l.b16 %v1053
        %v1093 = vunpack.c.l.b16 %v1054
        %v1094 = vunpack.c.l.b16 %v1055
        %v1095 = vunpack.c.l.b16 %v1056
        %v1096 = vunpack.c.l.b16 %v1057
        %v1097 = vunpack.c.l.b16 %v1058
        %v1098 = vunpack.c.l.b16 %v1059
        %v1099 = vunpack.c.l.b16 %v1060
        %v1100 = vunpack.c.l.b16 %v1061
        %v1101 = vunpack.c.l.b16 %v1062
        %v1102 = vunpack.c.l.b16 %v1063
        %v1103 = vunpack.c.l.b16 %v1064
        %v1104 = vunpack.c.l.b16 %v1065
        %v1105 = vunpack.c.l.b16 %v1066
        %v1106 = vunpack.c.l.b16 %v1067
        %v1107 = vpack.c.b16 %v1092, %v1091
        %v1108 = vpack.c.b16 %v1094, %v1093
        %v1109 = vpack.c.b16 %v1096, %v1095
        %v1110 = vpack.c.b16 %v1098, %v1097
        %v1111 = vpack.c.b16 %v1100, %v1099
        %v1112 = vpack.c.b16 %v1102, %v1101
        %v1113 = vpack.c.b16 %v1104, %v1103
        %v1114 = vpack.c.b16 %v1106, %v1105
        %1123 = vmatprep.subr.bf16.mxu0 0
        %1124 = vmatpush1.bf16.msra.mxu0 %v1114
        %1125 = vmatprep.subr.bf16.mxu0 0
        %1126 = vmatpush1.bf16.msra.mxu0 %v1113
        %1127 = vmatprep.subr.bf16.mxu0 0
        %1128 = vmatpush1.bf16.msra.mxu0 %v1112
        %1129 = vmatprep.subr.bf16.mxu0 0
        %1130 = vmatpush1.bf16.msra.mxu0 %v1111
        %1131 = vmatprep.subr.bf16.mxu0 0
        %1132 = vmatpush1.bf16.msra.mxu0 %v1110
        %1133 = vmatprep.subr.bf16.mxu0 0
        %1134 = vmatpush1.bf16.msra.mxu0 %v1109
        %1135 = vmatprep.subr.bf16.mxu0 0
        %1136 = vmatpush1.bf16.msra.mxu0 %v1108
        %1137 = vmatprep.subr.bf16.mxu0 0
        %1138 = vmatpush1.bf16.msra.mxu0 %v1107
        %1139 = vmatprep.subr.bf16.mxu0 0
        %1140 = vmatpush2.bf16.msra.mxu0 0
        %1141 = vmatprep.subr.bf16.mxu0 0
        %1142 = vmatpush2.bf16.msra.mxu0 0
        %1143 = vmatprep.subr.bf16.mxu0 0
        %1144 = vmatpush2.bf16.msra.mxu0 0
        %1145 = vmatprep.subr.bf16.mxu0 0
        %1146 = vmatpush2.bf16.msra.mxu0 0
        %1147 = vmatprep.subr.bf16.mxu0 0
        %1148 = vmatpush2.bf16.msra.mxu0 0
        %1149 = vmatprep.subr.bf16.mxu0 0
        %1150 = vmatpush2.bf16.msra.mxu0 0
        %1151 = vmatprep.subr.bf16.mxu0 0
        %1152 = vmatpush2.bf16.msra.mxu0 0
        %1153 = vmatprep.subr.bf16.mxu0 0
        %1154 = vmatpush2.bf16.msra.mxu0 0
        %1155 = vmatprep.mubr.bf16.mxu0 0
        %1156 = vmatmul.mubr.bf16.gmra.mxu0 %v940
        %v1157 = vpop.f32.mrf.mxu0
        %v1158 = vadd.f32 %v1073, %v1157
        %v1159 = vpop.f32.mrf.mxu0
        %v1160 = vpop.f32.mrf.mxu0
        %v1161 = vpop.f32.mrf.mxu0
        %1162 = vdwg.mxu0
        %v1163 = vadd.f32 %v1047, %v492
        %v1164 = vpack.c.bf16 %v1163, %v1163
        %v1165 = vadd.f32 %v1158, %v493
        %v1166 = vpack.c.bf16 %v1165, %v1165
        %v1167 = vld [vmem:[%s5] sm:$0xf]
        %v1168 = vld [vmem:[%s5 + $0x4] sm:$0xf]
        %v1169 = vld [vmem:[%s5 + $0x8] sm:$0xf]
        %v1170 = vld [vmem:[%s5 + $0xc] sm:$0xf]
        %v1171 = vld [vmem:[%s6] sm:$0xf]
        %v1172 = vld [vmem:[%s6 + $0x4] sm:$0xf]
        %v1175 = vunpack.c.l.b16 %v1171
        %v1176 = vunpack.c.l.b16 %v1172
        %v1177 = vpack.c.b16 %v1176, %v1175
        %v1180 = vsel %vm508, %v1166, 0
        %1182 = vmatprep.subr.bf16.mxu0 0
        %1183 = vmatpush1.bf16.msra.mxu0 0
        %1184 = vmatprep.subr.bf16.mxu0 0
        %1185 = vmatpush1.bf16.msra.mxu0 0
        %1186 = vmatprep.subr.bf16.mxu0 0
        %1187 = vmatpush1.bf16.msra.mxu0 0
        %1188 = vmatprep.subr.bf16.mxu0 0
        %1189 = vmatpush1.bf16.msra.mxu0 0
        %1190 = vmatprep.subr.bf16.mxu0 0
        %1191 = vmatpush1.bf16.msra.mxu0 0
        %1192 = vmatprep.subr.bf16.mxu0 0
        %1193 = vmatpush1.bf16.msra.mxu0 0
        %1194 = vmatprep.subr.bf16.mxu0 0
        %1195 = vmatpush1.bf16.msra.mxu0 0
        %1196 = vmatprep.subr.bf16.mxu0 0
        %1197 = vmatpush1.bf16.msra.mxu0 %v1177
        %1198 = vmatprep.subr.bf16.mxu0 0
        %1199 = vmatpush2.bf16.msra.mxu0 0
        %1200 = vmatprep.subr.bf16.mxu0 0
        %1201 = vmatpush2.bf16.msra.mxu0 0
        %1202 = vmatprep.subr.bf16.mxu0 0
        %1203 = vmatpush2.bf16.msra.mxu0 0
        %1204 = vmatprep.subr.bf16.mxu0 0
        %1205 = vmatpush2.bf16.msra.mxu0 0
        %1206 = vmatprep.subr.bf16.mxu0 0
        %1207 = vmatpush2.bf16.msra.mxu0 0
        %1208 = vmatprep.subr.bf16.mxu0 0
        %1209 = vmatpush2.bf16.msra.mxu0 0
        %1210 = vmatprep.subr.bf16.mxu0 0
        %1211 = vmatpush2.bf16.msra.mxu0 0
        %1212 = vmatprep.subr.bf16.mxu0 0
        %1213 = vmatpush2.bf16.msra.mxu0 0
        %1214 = vmatprep.mubr.bf16.mxu0 0
        %1215 = vmatmul.mubr.bf16.gmra.mxu0 %v1180
        %v1216 = vpop.f32.mrf.mxu0
        %v1217 = vadd.f32 0.0, %v1216
        %v1218 = vpop.f32.mrf.mxu0
        %v1219 = vpop.f32.mrf.mxu0
        %v1220 = vpop.f32.mrf.mxu0
        %1221 = vdwg.mxu0
        %v1226 = vunpack.c.l.b16 %v1167
        %v1227 = vunpack.c.l.b16 %v1168
        %v1228 = vunpack.c.l.b16 %v1169
        %v1229 = vunpack.c.l.b16 %v1170
        %v1230 = vpack.c.b16 %v1227, %v1226
        %v1231 = vpack.c.b16 %v1229, %v1228
        %v1235 = vsel %vm564, %v1164, 0
        %1237 = vmatprep.subr.bf16.mxu0 0
        %1238 = vmatpush1.bf16.msra.mxu0 0
        %1239 = vmatprep.subr.bf16.mxu0 0
        %1240 = vmatpush1.bf16.msra.mxu0 0
        %1241 = vmatprep.subr.bf16.mxu0 0
        %1242 = vmatpush1.bf16.msra.mxu0 0
        %1243 = vmatprep.subr.bf16.mxu0 0
        %1244 = vmatpush1.bf16.msra.mxu0 0
        %1245 = vmatprep.subr.bf16.mxu0 0
        %1246 = vmatpush1.bf16.msra.mxu0 0
        %1247 = vmatprep.subr.bf16.mxu0 0
        %1248 = vmatpush1.bf16.msra.mxu0 0
        %1249 = vmatprep.subr.bf16.mxu0 0
        %1250 = vmatpush1.bf16.msra.mxu0 %v1231
        %1251 = vmatprep.subr.bf16.mxu0 0
        %1252 = vmatpush1.bf16.msra.mxu0 %v1230
        %1253 = vmatprep.subr.bf16.mxu0 0
        %1254 = vmatpush2.bf16.msra.mxu0 0
        %1255 = vmatprep.subr.bf16.mxu0 0
        %1256 = vmatpush2.bf16.msra.mxu0 0
        %1257 = vmatprep.subr.bf16.mxu0 0
        %1258 = vmatpush2.bf16.msra.mxu0 0
        %1259 = vmatprep.subr.bf16.mxu0 0
        %1260 = vmatpush2.bf16.msra.mxu0 0
        %1261 = vmatprep.subr.bf16.mxu0 0
        %1262 = vmatpush2.bf16.msra.mxu0 0
        %1263 = vmatprep.subr.bf16.mxu0 0
        %1264 = vmatpush2.bf16.msra.mxu0 0
        %1265 = vmatprep.subr.bf16.mxu0 0
        %1266 = vmatpush2.bf16.msra.mxu0 0
        %1267 = vmatprep.subr.bf16.mxu0 0
        %1268 = vmatpush2.bf16.msra.mxu0 0
        %1269 = vmatprep.mubr.bf16.mxu0 0
        %1270 = vmatmul.mubr.bf16.gmra.mxu0 %v1235
        %v1271 = vpop.f32.mrf.mxu0
        %v1272 = vadd.f32 %v1217, %v1271
        %v1273 = vpop.f32.mrf.mxu0
        %v1274 = vpop.f32.mrf.mxu0
        %v1275 = vpop.f32.mrf.mxu0
        %1276 = vdwg.mxu0
        %s1277 = scalar_lea.vmem %s10, 1
        %v1278 = vld [vmem:[%s1277] sm:$0x1]
        %v1280 = vlaneseq
        %v1281 = vshrl.u32 %v1280, 7
        %v1282 = vsub.s32 0, %v1281
        %v1283 = vrot.slane %v1278, %v1282
        %v1285 = vadd.f32 %v1272, %v1283
        %v1286 = vmax.f32 %v1285, 0.0
        %v1287 = vpack.c.bf16 %v1286, %v1286
        %s1288 = scalar_lea.vmem %s7, 64
        %v1289 = vld [vmem:[%s1288] sm:$0xf]
        %v1290 = vld [vmem:[%s1288 + $0x4] sm:$0xf]
        %v1291 = vld [vmem:[%s1288 + $0x8] sm:$0xf]
        %v1292 = vld [vmem:[%s1288 + $0xc] sm:$0xf]
        %v1293 = vld [vmem:[%s1288 + $0x10] sm:$0xf]
        %v1294 = vld [vmem:[%s1288 + $0x14] sm:$0xf]
        %v1295 = vld [vmem:[%s1288 + $0x18] sm:$0xf]
        %v1296 = vld [vmem:[%s1288 + $0x1c] sm:$0xf]
        %v1297 = vld [vmem:[%s1288 + $0x20] sm:$0xf]
        %v1298 = vld [vmem:[%s1288 + $0x24] sm:$0xf]
        %v1299 = vld [vmem:[%s1288 + $0x28] sm:$0xf]
        %v1300 = vld [vmem:[%s1288 + $0x2c] sm:$0xf]
        %v1301 = vld [vmem:[%s1288 + $0x30] sm:$0xf]
        %v1302 = vld [vmem:[%s1288 + $0x34] sm:$0xf]
        %v1303 = vld [vmem:[%s1288 + $0x38] sm:$0xf]
        %v1304 = vld [vmem:[%s1288 + $0x3c] sm:$0xf]
        %s1305 = scalar_lea.vmem %s11, 1
        %v1306 = vld [vmem:[%s1305] sm:$0x1]
        %v1308 = vlaneseq
        %v1309 = vshrl.u32 %v1308, 7
        %v1310 = vsub.s32 0, %v1309
        %v1311 = vrot.slane %v1306, %v1310
        %v1329 = vunpack.c.l.b16 %v1289
        %v1330 = vunpack.c.l.b16 %v1290
        %v1331 = vunpack.c.l.b16 %v1291
        %v1332 = vunpack.c.l.b16 %v1292
        %v1333 = vunpack.c.l.b16 %v1293
        %v1334 = vunpack.c.l.b16 %v1294
        %v1335 = vunpack.c.l.b16 %v1295
        %v1336 = vunpack.c.l.b16 %v1296
        %v1337 = vunpack.c.l.b16 %v1297
        %v1338 = vunpack.c.l.b16 %v1298
        %v1339 = vunpack.c.l.b16 %v1299
        %v1340 = vunpack.c.l.b16 %v1300
        %v1341 = vunpack.c.l.b16 %v1301
        %v1342 = vunpack.c.l.b16 %v1302
        %v1343 = vunpack.c.l.b16 %v1303
        %v1344 = vunpack.c.l.b16 %v1304
        %v1345 = vpack.c.b16 %v1330, %v1329
        %v1346 = vpack.c.b16 %v1332, %v1331
        %v1347 = vpack.c.b16 %v1334, %v1333
        %v1348 = vpack.c.b16 %v1336, %v1335
        %v1349 = vpack.c.b16 %v1338, %v1337
        %v1350 = vpack.c.b16 %v1340, %v1339
        %v1351 = vpack.c.b16 %v1342, %v1341
        %v1352 = vpack.c.b16 %v1344, %v1343
        %1361 = vmatprep.subr.bf16.mxu0 0
        %1362 = vmatpush1.bf16.msra.mxu0 %v1352
        %1363 = vmatprep.subr.bf16.mxu0 0
        %1364 = vmatpush1.bf16.msra.mxu0 %v1351
        %1365 = vmatprep.subr.bf16.mxu0 0
        %1366 = vmatpush1.bf16.msra.mxu0 %v1350
        %1367 = vmatprep.subr.bf16.mxu0 0
        %1368 = vmatpush1.bf16.msra.mxu0 %v1349
        %1369 = vmatprep.subr.bf16.mxu0 0
        %1370 = vmatpush1.bf16.msra.mxu0 %v1348
        %1371 = vmatprep.subr.bf16.mxu0 0
        %1372 = vmatpush1.bf16.msra.mxu0 %v1347
        %1373 = vmatprep.subr.bf16.mxu0 0
        %1374 = vmatpush1.bf16.msra.mxu0 %v1346
        %1375 = vmatprep.subr.bf16.mxu0 0
        %1376 = vmatpush1.bf16.msra.mxu0 %v1345
        %1377 = vmatprep.subr.bf16.mxu0 0
        %1378 = vmatpush2.bf16.msra.mxu0 0
        %1379 = vmatprep.subr.bf16.mxu0 0
        %1380 = vmatpush2.bf16.msra.mxu0 0
        %1381 = vmatprep.subr.bf16.mxu0 0
        %1382 = vmatpush2.bf16.msra.mxu0 0
        %1383 = vmatprep.subr.bf16.mxu0 0
        %1384 = vmatpush2.bf16.msra.mxu0 0
        %1385 = vmatprep.subr.bf16.mxu0 0
        %1386 = vmatpush2.bf16.msra.mxu0 0
        %1387 = vmatprep.subr.bf16.mxu0 0
        %1388 = vmatpush2.bf16.msra.mxu0 0
        %1389 = vmatprep.subr.bf16.mxu0 0
        %1390 = vmatpush2.bf16.msra.mxu0 0
        %1391 = vmatprep.subr.bf16.mxu0 0
        %1392 = vmatpush2.bf16.msra.mxu0 0
        %1393 = vmatprep.mubr.bf16.mxu0 0
        %1394 = vmatmul.mubr.bf16.gmra.mxu0 %v1287
        %v1395 = vpop.f32.mrf.mxu0
        %v1396 = vadd.f32 %v1311, %v1395
        %v1397 = vpop.f32.mrf.mxu0
        %v1398 = vpop.f32.mrf.mxu0
        %v1399 = vpop.f32.mrf.mxu0
        %1400 = vdwg.mxu0
        %s1401 = scalar_lea.vmem %s8, 64
        %v1402 = vld [vmem:[%s1401] sm:$0xf]
        %v1403 = vld [vmem:[%s1401 + $0x4] sm:$0xf]
        %v1404 = vld [vmem:[%s1401 + $0x8] sm:$0xf]
        %v1405 = vld [vmem:[%s1401 + $0xc] sm:$0xf]
        %v1406 = vld [vmem:[%s1401 + $0x10] sm:$0xf]
        %v1407 = vld [vmem:[%s1401 + $0x14] sm:$0xf]
        %v1408 = vld [vmem:[%s1401 + $0x18] sm:$0xf]
        %v1409 = vld [vmem:[%s1401 + $0x1c] sm:$0xf]
        %v1410 = vld [vmem:[%s1401 + $0x20] sm:$0xf]
        %v1411 = vld [vmem:[%s1401 + $0x24] sm:$0xf]
        %v1412 = vld [vmem:[%s1401 + $0x28] sm:$0xf]
        %v1413 = vld [vmem:[%s1401 + $0x2c] sm:$0xf]
        %v1414 = vld [vmem:[%s1401 + $0x30] sm:$0xf]
        %v1415 = vld [vmem:[%s1401 + $0x34] sm:$0xf]
        %v1416 = vld [vmem:[%s1401 + $0x38] sm:$0xf]
        %v1417 = vld [vmem:[%s1401 + $0x3c] sm:$0xf]
        %s1418 = scalar_lea.vmem %s12, 1
        %v1419 = vld [vmem:[%s1418] sm:$0x1]
        %v1421 = vlaneseq
        %v1422 = vshrl.u32 %v1421, 7
        %v1423 = vsub.s32 0, %v1422
        %v1424 = vrot.slane %v1419, %v1423
        %v1442 = vunpack.c.l.b16 %v1402
        %v1443 = vunpack.c.l.b16 %v1403
        %v1444 = vunpack.c.l.b16 %v1404
        %v1445 = vunpack.c.l.b16 %v1405
        %v1446 = vunpack.c.l.b16 %v1406
        %v1447 = vunpack.c.l.b16 %v1407
        %v1448 = vunpack.c.l.b16 %v1408
        %v1449 = vunpack.c.l.b16 %v1409
        %v1450 = vunpack.c.l.b16 %v1410
        %v1451 = vunpack.c.l.b16 %v1411
        %v1452 = vunpack.c.l.b16 %v1412
        %v1453 = vunpack.c.l.b16 %v1413
        %v1454 = vunpack.c.l.b16 %v1414
        %v1455 = vunpack.c.l.b16 %v1415
        %v1456 = vunpack.c.l.b16 %v1416
        %v1457 = vunpack.c.l.b16 %v1417
        %v1458 = vpack.c.b16 %v1443, %v1442
        %v1459 = vpack.c.b16 %v1445, %v1444
        %v1460 = vpack.c.b16 %v1447, %v1446
        %v1461 = vpack.c.b16 %v1449, %v1448
        %v1462 = vpack.c.b16 %v1451, %v1450
        %v1463 = vpack.c.b16 %v1453, %v1452
        %v1464 = vpack.c.b16 %v1455, %v1454
        %v1465 = vpack.c.b16 %v1457, %v1456
        %1474 = vmatprep.subr.bf16.mxu0 0
        %1475 = vmatpush1.bf16.msra.mxu0 %v1465
        %1476 = vmatprep.subr.bf16.mxu0 0
        %1477 = vmatpush1.bf16.msra.mxu0 %v1464
        %1478 = vmatprep.subr.bf16.mxu0 0
        %1479 = vmatpush1.bf16.msra.mxu0 %v1463
        %1480 = vmatprep.subr.bf16.mxu0 0
        %1481 = vmatpush1.bf16.msra.mxu0 %v1462
        %1482 = vmatprep.subr.bf16.mxu0 0
        %1483 = vmatpush1.bf16.msra.mxu0 %v1461
        %1484 = vmatprep.subr.bf16.mxu0 0
        %1485 = vmatpush1.bf16.msra.mxu0 %v1460
        %1486 = vmatprep.subr.bf16.mxu0 0
        %1487 = vmatpush1.bf16.msra.mxu0 %v1459
        %1488 = vmatprep.subr.bf16.mxu0 0
        %1489 = vmatpush1.bf16.msra.mxu0 %v1458
        %1490 = vmatprep.subr.bf16.mxu0 0
        %1491 = vmatpush2.bf16.msra.mxu0 0
        %1492 = vmatprep.subr.bf16.mxu0 0
        %1493 = vmatpush2.bf16.msra.mxu0 0
        %1494 = vmatprep.subr.bf16.mxu0 0
        %1495 = vmatpush2.bf16.msra.mxu0 0
        %1496 = vmatprep.subr.bf16.mxu0 0
        %1497 = vmatpush2.bf16.msra.mxu0 0
        %1498 = vmatprep.subr.bf16.mxu0 0
        %1499 = vmatpush2.bf16.msra.mxu0 0
        %1500 = vmatprep.subr.bf16.mxu0 0
        %1501 = vmatpush2.bf16.msra.mxu0 0
        %1502 = vmatprep.subr.bf16.mxu0 0
        %1503 = vmatpush2.bf16.msra.mxu0 0
        %1504 = vmatprep.subr.bf16.mxu0 0
        %1505 = vmatpush2.bf16.msra.mxu0 0
        %1506 = vmatprep.mubr.bf16.mxu0 0
        %1507 = vmatmul.mubr.bf16.gmra.mxu0 %v1287
        %v1508 = vpop.f32.mrf.mxu0
        %v1509 = vadd.f32 %v1424, %v1508
        %v1510 = vpop.f32.mrf.mxu0
        %v1511 = vpop.f32.mrf.mxu0
        %v1512 = vpop.f32.mrf.mxu0
        %1513 = vdwg.mxu0
        %1514 = vst.msk [vmem:[%s475] sm:$0xff] %vm564, %v1396
        %1515 = vst.msk [vmem:[%s482] sm:$0xff] %vm508, %v1509
        %s1516 = sand.u32 %s323, 1
        %s1517 = scalar_lea.sflag [#allocation3], %s1516
        %s1518 = sand.u32 %s323, 1
        %s1519 = smul.addr %s1518, 8
        %s1520 = scalar_lea.vmem [#allocation2], %s1519
        %s1521 = sand.u32 %s349, 1
        %s1522 = scalar_lea.sflag [#allocation5], %s1521
        %s1523 = sand.u32 %s349, 1
        %s1524 = smul.addr %s1523, 8
        %s1525 = scalar_lea.vmem [#allocation4], %s1524
        // Predicated region
        $region73: #{tpu_custom_call.1} parent=71 // pred_check
          %p1526 = pneg %p333
        $region74: #{tpu_custom_call.1} parent=71 // pred_check_branch
          %1528 = sbr.rel (%p1526) target = $region76
        $region75: #{tpu_custom_call.1} parent=71 // pred_region
          %s1530 = ssub.s32 128, 128
          %1531 = vsyncadd %s1517, %s1530
          %s1532 = smul.addr %s32, 128
          %s1533 = scalar_lea.hbm %s13, %s1532
          %s1535 = sshll.u32 %s1520, 4
          %s1536 = int_to_ptr.vmem [resolvable:$true] %s1535
          %1538 = dma.vmem_to_hbm [thread:$0]  %s1536, 128, %s1533, %s1517
        $region76: #{tpu_custom_call.1} parent=71 // pred_fallthru
          _
        // Predicated region
        $region77: #{tpu_custom_call.1} parent=71 // pred_check
          %p1539 = pneg %p359
        $region78: #{tpu_custom_call.1} parent=71 // pred_check_branch
          %1541 = sbr.rel (%p1539) target = $region80
        $region79: #{tpu_custom_call.1} parent=71 // pred_region
          %s1543 = ssub.s32 128, 128
          %1544 = vsyncadd %s1522, %s1543
          %s1545 = smul.addr %s32, 128
          %s1546 = scalar_lea.hbm %s14, %s1545
          %s1548 = sshll.u32 %s1525, 4
          %s1549 = int_to_ptr.vmem [resolvable:$true] %s1548
          %1551 = dma.vmem_to_hbm [thread:$0]  %s1549, 128, %s1546, %s1522
        $region80: #{tpu_custom_call.1} parent=71 // pred_fallthru
          _
      $region72: #{tpu_custom_call.1} parent=5 // pred_fallthru
        _
      %p1552 = scmp.le.s32.totalorder 2, %s27
      // Predicated region
      $region81: #{tpu_custom_call.1} parent=5 // pred_check
        %p1553 = pneg %p1552
      $region82: #{tpu_custom_call.1} parent=5 // pred_check_branch
        %1555 = sbr.rel (%p1553) target = $region84
      $region83: #{tpu_custom_call.1} parent=5 // pred_region
        %s1556 = ssub.s32 %s27, 2
        // Predicated region
        $region85: #{tpu_custom_call.1} parent=83 // pred_check
          %p1557 = pneg %p339
        $region86: #{tpu_custom_call.1} parent=83 // pred_check_branch
          %1559 = sbr.rel (%p1557) target = $region88
        $region87: #{tpu_custom_call.1} parent=83 // pred_region
          %s1560 = sand.u32 %s324, 1
          %s1561 = scalar_lea.sflag [#allocation3], %s1560
          %s1562 = sand.u32 %s324, 1
          %s1563 = smul.addr %s1562, 8
          %s1564 = scalar_lea.vmem [#allocation2], %s1563
          %1565 = dma.done %s1561, 128
        $region88: #{tpu_custom_call.1} parent=83 // pred_fallthru
          _
        // Predicated region
        $region89: #{tpu_custom_call.1} parent=83 // pred_check
          %p1566 = pneg %p365
        $region90: #{tpu_custom_call.1} parent=83 // pred_check_branch
          %1568 = sbr.rel (%p1566) target = $region92
        $region91: #{tpu_custom_call.1} parent=83 // pred_region
          %s1569 = sand.u32 %s350, 1
          %s1570 = scalar_lea.sflag [#allocation5], %s1569
          %s1571 = sand.u32 %s350, 1
          %s1572 = smul.addr %s1571, 8
          %s1573 = scalar_lea.vmem [#allocation4], %s1572
          %1574 = dma.done %s1570, 128
        $region92: #{tpu_custom_call.1} parent=83 // pred_fallthru
          _
      $region84: #{tpu_custom_call.1} parent=5 // pred_fallthru
        _
    $region6: #{tpu_custom_call.1} parent=1 // loop_footer
      %s31 = sadd.s32 1, %s27
    $region7: #{tpu_custom_call.1} parent=1 // loop_footer_branch
      %26 = sbr.rel target = $region3
    $region8: #{tpu_custom_call.1} parent=1 // loop_exit
      _
    %1575 = vsyncpa [#allocation3], 1
    %s1576 = scalar_lea.sflag [#allocation3], 1
    %1577 = vsyncpa %s1576, 1
    %1578 = vsyncpa [#allocation5], 1
    %s1579 = scalar_lea.sflag [#allocation5], 1
    %1580 = vsyncpa %s1579, 1

</llo_original>
